<compile_context>
chip_gen: v7x
topology: tpu7x:2x2x1
jax: 0.10.0
libtpu: 0.0.40
codegen_flags: <defaults>
</compile_context>

<pallas_src>
import jax
import jax.numpy as jnp
from jax import lax
from jax.experimental import pallas as pl
from jax.experimental.pallas import tpu as pltpu


def bottleneck_kernel(x_ref, w1_ref, b1_ref, w2_ref, b2_ref, w3_ref, b3_ref,
                      o_ref, h1_ref, lhs_ref):
    H, W, Cin = x_ref.shape           # full NHWC image for one batch element
    TH, _, Cout = o_ref.shape         # row tile of the output
    P = w1_ref.shape[1]
    MT = TH * W                       # flattened output rows of this tile
    WIN = (TH + 2) * W                # tile rows + one halo row above/below
    # Roll wrap-around safety: winL wraps only at flat index 0, winR only at
    # WIN-1.  Because WIN % W == 0 those positions have column 0 / W-1 and are
    # zeroed by the edge masks below (geometry deliberately tied together).
    assert WIN % W == 0 and MT % W == 0

    t = pl.program_id(1)
    nt = pl.num_programs(1)
    r0 = pl.multiple_of(t * TH, TH)   # first image row of this tile

    w1 = w1_ref[...]
    b1 = b1_ref[...]

    def conv1(rows_bf16):             # (M, Cin) bf16 -> (M, P) f32 (BN folded)
        h = jnp.dot(rows_bf16, w1, preferred_element_type=jnp.float32)
        return jnp.maximum(h + b1, 0.0)

    # ---- conv1x1 (Cin -> P) + bias + ReLU over the TH tile rows -------------
    xf = x_ref[pl.ds(r0, TH), :, :].reshape(MT, Cin).astype(jnp.bfloat16)
    h1_ref[W:W + MT, :] = conv1(xf)

    # ---- halo rows: recompute conv1 for row r0-1 / r0+TH, or zero at edges --
    @pl.when(t == 0)
    def _():
        h1_ref[0:W, :] = jnp.zeros((W, P), jnp.float32)

    @pl.when(t > 0)
    def _():
        xt = x_ref[pl.ds(r0 - 1, 1), :, :].reshape(W, Cin).astype(jnp.bfloat16)
        h1_ref[0:W, :] = conv1(xt)

    @pl.when(t == nt - 1)
    def _():
        h1_ref[W + MT:WIN, :] = jnp.zeros((W, P), jnp.float32)

    @pl.when(t < nt - 1)
    def _():
        xb = x_ref[pl.ds(r0 + TH, 1), :, :].reshape(W, Cin).astype(jnp.bfloat16)
        h1_ref[W + MT:WIN, :] = conv1(xb)

    # ---- 3x3 conv (pad=1, stride=1): lane-concatenated LHS ------------------
    # lhs_ref[j, :] = [ h1[j-1]*maskL | h1[j] | h1[j+1]*maskR ]  (bf16, 3P lanes)
    win = h1_ref[...]                                         # (WIN, P) f32
    colw = lax.broadcasted_iota(jnp.int32, (WIN, 1), 0) % W   # column of flat row
    winL = jnp.where(colw >= 1, pltpu.roll(win, shift=1, axis=0), 0.0)
    winR = jnp.where(colw <= W - 2, pltpu.roll(win, shift=WIN - 1, axis=0), 0.0)
    lhs_ref[:, 0:P] = winL.astype(jnp.bfloat16)
    lhs_ref[:, P:2 * P] = win.astype(jnp.bfloat16)
    lhs_ref[:, 2 * P:3 * P] = winR.astype(jnp.bfloat16)

    # Three K=3P matmuls (one per kernel row dy); f32 accumulation on the MXU.
    acc = jnp.dot(lhs_ref[0:MT, :], w2_ref[0],
                  preferred_element_type=jnp.float32)
    acc = acc + jnp.dot(lhs_ref[W:W + MT, :], w2_ref[1],
                        preferred_element_type=jnp.float32)
    acc = acc + jnp.dot(lhs_ref[2 * W:2 * W + MT, :], w2_ref[2],
                        preferred_element_type=jnp.float32)
    h2 = jnp.maximum(acc + b2_ref[...], 0.0)

    # ---- conv1x1 (P -> 4P) + bias, residual add, final ReLU -----------------
    h3 = jnp.dot(h2.astype(jnp.bfloat16), w3_ref[...],
                 preferred_element_type=jnp.float32)
    xres = x_ref[pl.ds(r0, TH), :, :].reshape(MT, Cout)       # f32 residual
    out = jnp.maximum(h3 + b3_ref[...] + xres, 0.0)
    o_ref[...] = out.reshape(TH, W, Cout).astype(o_ref.dtype)


def _pick_row_tile(H, W, target_mt):
    """Largest divisor TH of H with TH*W <= target_mt (always >= 1)."""
    best = 1
    for th in range(1, H + 1):
        if H % th == 0 and th * W <= max(target_mt, W):
            best = th
    return best


def bottleneck_forward(x_nchw, params, target_mt=128):
    w1, b1, w2, b2, w3, b3 = params
    x = jnp.transpose(x_nchw, (0, 2, 3, 1))                   # NCHW -> NHWC
    N, H, W, Cin = x.shape
    P = w1.shape[1]
    Cout = w3.shape[1]
    assert Cout == Cin, "downsample=None path requires in_channels == 4*planes"

    # MT = TH*W ~ 128 fills the v5e MXU and keeps vreg pressure low; use
    # target_mt=256 on v6e/v7x if profiling shows MXU under-fill.
    # TODO(synk): cdiv + masked last tile for H with no good divisor (e.g. 7).
    TH = _pick_row_tile(H, W, target_mt)
    HT = H // TH

    flops = 2 * N * H * W * (Cin * P + 9 * P * P + P * Cout)
    bytes_accessed = int(2 * x.size * 4
                         + (w1.size + w2.size + w3.size) * 2
                         + (b1.size + b2.size + b3.size) * 4)
    cost = pl.CostEstimate(flops=flops, transcendentals=0,
                           bytes_accessed=bytes_accessed)

    out = pl.pallas_call(
        bottleneck_kernel,
        out_shape=jax.ShapeDtypeStruct((N, H, W, Cout), x.dtype),
        grid_spec=pltpu.PrefetchScalarGridSpec(
            num_scalar_prefetch=0,
            grid=(N, HT),                                     # (batch, row tiles)
            in_specs=[
                # Full image resident per n (block index independent of t).
                pl.BlockSpec((None, H, W, Cin), lambda n, t: (n, 0, 0, 0)),
                pl.BlockSpec((Cin, P), lambda n, t: (0, 0)),
                pl.BlockSpec((1, P), lambda n, t: (0, 0)),
                pl.BlockSpec((3, 3 * P, P), lambda n, t: (0, 0, 0)),
                pl.BlockSpec((1, P), lambda n, t: (0, 0)),
                pl.BlockSpec((P, Cout), lambda n, t: (0, 0)),
                pl.BlockSpec((1, Cout), lambda n, t: (0, 0)),
            ],
            out_specs=pl.BlockSpec((None, TH, W, Cout), lambda n, t: (n, t, 0, 0)),
            scratch_shapes=[
                pltpu.VMEM(((TH + 2) * W, P), jnp.float32),       # conv1 window
                pltpu.VMEM(((TH + 2) * W, 3 * P), jnp.bfloat16),  # concat LHS
            ],
        ),
        compiler_params=pltpu.CompilerParams(
            # No cross-step dependency anymore -> both axes parallel.
            dimension_semantics=("parallel", "parallel"),
        ),
        cost_estimate=cost,
    )(x, w1, b1, w2, b2, w3, b3)
    return jnp.transpose(out, (0, 3, 1, 2))                   # NHWC -> NCHW


def init_params(key, in_channels, planes, kernel_size=3, eps=1e-5):
    """Deterministic synthetic parameters (PyTorch OIHW weights, repacked).

    Eval-mode BN (running_mean=0, running_var=1) folds to a per-output-channel
    scale gamma/sqrt(1+eps) which is multiplied into the conv weights in f32
    before the bf16 cast; only the biases remain as separate f32 tensors.
    """
    assert kernel_size == 3
    keys = jax.random.split(key, 9)
    P, C4 = planes, 4 * planes
    w1_oihw = 0.1 * jax.random.normal(keys[0], (P, in_channels, 1, 1), jnp.float32)
    w2_oihw = 0.1 * jax.random.normal(keys[1], (P, P, 3, 3), jnp.float32)
    w3_oihw = 0.1 * jax.random.normal(keys[2], (C4, P, 1, 1), jnp.float32)
    g1 = 1.0 + 0.1 * jax.random.normal(keys[3], (P,), jnp.float32)
    b1 = 0.1 * jax.random.normal(keys[4], (P,), jnp.float32)
    g2 = 1.0 + 0.1 * jax.random.normal(keys[5], (P,), jnp.float32)
    b2 = 0.1 * jax.random.normal(keys[6], (P,), jnp.float32)
    g3 = 1.0 + 0.1 * jax.random.normal(keys[7], (C4,), jnp.float32)
    b3 = 0.1 * jax.random.normal(keys[8], (C4,), jnp.float32)

    # TODO(synk): real checkpoints need the full (x-mean)*gamma*rsqrt(var+eps)+beta fold.
    s1 = g1 / jnp.sqrt(1.0 + eps)
    s2 = g2 / jnp.sqrt(1.0 + eps)
    s3 = g3 / jnp.sqrt(1.0 + eps)

    # conv1: (Cin, P), BN scale folded on the output channels.
    w1 = (jnp.transpose(w1_oihw[:, :, 0, 0], (1, 0)) * s1[None, :]).astype(jnp.bfloat16)
    # conv2: OIHW -> (dy, dx, in, out), fold s2 on out, pack as (3, 3P, P) with
    # rows ordered [dx=0 (left) | dx=1 (center) | dx=2 (right)] x in-channel —
    # matching the lane order of the concatenated LHS built in the kernel.
    w2 = (jnp.transpose(w2_oihw, (2, 3, 1, 0)) * s2[None, None, None, :]) \
        .reshape(3, 3 * P, P).astype(jnp.bfloat16)
    # conv3: (P, 4P), BN scale folded on the output channels.
    w3 = (jnp.transpose(w3_oihw[:, :, 0, 0], (1, 0)) * s3[None, :]).astype(jnp.bfloat16)

    return (w1, b1.reshape(1, P), w2, b2.reshape(1, P), w3, b3.reshape(1, C4))


def ref_forward(x_nchw, params):
    """Pure-JAX reference with the same bf16 rounding points as the kernel."""
    w1, b1, w2, b2, w3, b3 = params
    x = jnp.transpose(x_nchw, (0, 2, 3, 1))
    N, H, W, _ = x.shape
    P = w1.shape[1]

    h = jnp.einsum('nhwc,cp->nhwp', x.astype(jnp.bfloat16), w1,
                   preferred_element_type=jnp.float32)
    h = jnp.maximum(h + b1[0], 0.0)

    hp = jnp.pad(h.astype(jnp.bfloat16), ((0, 0), (1, 1), (1, 1), (0, 0)))
    w2u = w2.reshape(3, 3, P, P)                               # [dy, dx, p, q]
    acc = jnp.zeros((N, H, W, P), jnp.float32)
    for dy in range(3):
        for dx in range(3):
            acc = acc + jnp.einsum('nhwp,pq->nhwq',
                                   hp[:, dy:dy + H, dx:dx + W, :], w2u[dy, dx],
                                   preferred_element_type=jnp.float32)
    h = jnp.maximum(acc + b2[0], 0.0)

    h = jnp.einsum('nhwp,pq->nhwq', h.astype(jnp.bfloat16), w3,
                   preferred_element_type=jnp.float32)
    out = jnp.maximum(h + b3[0] + x, 0.0)
    return jnp.transpose(out, (0, 3, 1, 2))


if __name__ == "__main__":
    key = jax.random.PRNGKey(0)
    k_x, k_p = jax.random.split(key)

    # Residual (downsample=None) requires in_channels == 4*planes.
    # planes=32 -> Cout = 128 so output stores are fully lane-dense.
    N, planes, H, W = 2, 32, 16, 16
    in_channels = 4 * planes
    x = jax.random.normal(k_x, (N, in_channels, H, W), jnp.float32)   # NCHW like PyTorch
    params = init_params(k_p, in_channels, planes)

    out = jax.block_until_ready(bottleneck_forward(x, params))
    ref = ref_forward(x, params)

    assert out.shape == (N, in_channels, H, W)
    max_diff = float(jnp.max(jnp.abs(out - ref)))
    assert jnp.allclose(out, ref, atol=5e-3, rtol=5e-3), f"max abs diff = {max_diff}"

    print("KERNEL_OK")
</pallas_src>

<mosaic_0001>
module attributes {stable_mosaic.version = 11 : i64} {
  func.func @bottleneck_kernel(%arg0: i32, %arg1: i32, %arg2: memref<1x16x16x128xf32, #tpu.memory_space<vmem>>, %arg3: memref<128x32xbf16, #tpu.memory_space<vmem>>, %arg4: memref<1x32xf32, #tpu.memory_space<vmem>>, %arg5: memref<3x96x32xbf16, #tpu.memory_space<vmem>>, %arg6: memref<1x32xf32, #tpu.memory_space<vmem>>, %arg7: memref<32x128xbf16, #tpu.memory_space<vmem>>, %arg8: memref<1x128xf32, #tpu.memory_space<vmem>>, %arg9: memref<1x8x16x128xf32, #tpu.memory_space<vmem>>, %arg10: memref<160x32xf32, #tpu.memory_space<vmem>>, %arg11: memref<160x96xbf16, #tpu.memory_space<vmem>>) attributes {dimension_semantics = [#tpu.dimension_semantics<parallel>, #tpu.dimension_semantics<parallel>], iteration_bounds = array<i64: 2, 2>, scalar_prefetch = 0 : i64, scratch_operands = 2 : i64, tpu.core_type = #tpu.core_type<tc>, window_params = [{transform_indices = @transform_0, window_bounds = array<i64: 1, 16, 16, 128>}, {pipeline_mode = #tpu.pipeline_mode<synchronous>, transform_indices = @transform_1, window_bounds = array<i64: 128, 32>}, {pipeline_mode = #tpu.pipeline_mode<synchronous>, transform_indices = @transform_2, window_bounds = array<i64: 1, 32>}, {pipeline_mode = #tpu.pipeline_mode<synchronous>, transform_indices = @transform_3, window_bounds = array<i64: 3, 96, 32>}, {pipeline_mode = #tpu.pipeline_mode<synchronous>, transform_indices = @transform_4, window_bounds = array<i64: 1, 32>}, {pipeline_mode = #tpu.pipeline_mode<synchronous>, transform_indices = @transform_5, window_bounds = array<i64: 32, 128>}, {pipeline_mode = #tpu.pipeline_mode<synchronous>, transform_indices = @transform_6, window_bounds = array<i64: 1, 128>}, {transform_indices = @transform_7, window_bounds = array<i64: 1, 8, 16, 128>}]} {
    %c8_i32 = arith.constant 8 : i32
    %0 = arith.muli %arg1, %c8_i32 : i32
    %1 = tpu.assume_multiple %0, 8 : i32
    %c0 = arith.constant 0 : index
    %c0_0 = arith.constant 0 : index
    %2 = vector.load %arg3[%c0, %c0_0] : memref<128x32xbf16, #tpu.memory_space<vmem>>, vector<128x32xbf16>
    %c0_1 = arith.constant 0 : index
    %c0_2 = arith.constant 0 : index
    %3 = vector.load %arg4[%c0_1, %c0_2] : memref<1x32xf32, #tpu.memory_space<vmem>>, vector<1x32xf32>
    %c0_3 = arith.constant 0 : index
    %4 = arith.index_cast %1 : i32 to index
    %c0_4 = arith.constant 0 : index
    %c0_5 = arith.constant 0 : index
    %5 = vector.load %arg2[%c0_3, %4, %c0_4, %c0_5] : memref<1x16x16x128xf32, #tpu.memory_space<vmem>>, vector<1x8x16x128xf32>
    %6 = vector.shape_cast %5 : vector<1x8x16x128xf32> to vector<8x16x128xf32>
    %7 = vector.shape_cast %6 : vector<8x16x128xf32> to vector<128x128xf32>
    %8 = arith.truncf %7 : vector<128x128xf32> to vector<128x128xbf16>
    %cst = arith.constant dense<0.000000e+00> : vector<128x32xf32>
    %9 = tpu.matmul %8, %2, %cst {dimension_numbers = #tpu.dot_dimension_numbers<[1], [0], [0], [1], [0, 0, 1, 1], [], []>} : vector<128x128xbf16>, vector<128x32xbf16>, vector<128x32xf32> -> vector<128x32xf32>
    %10 = vector.broadcast %3 : vector<1x32xf32> to vector<128x32xf32>
    %11 = arith.addf %9, %10 : vector<128x32xf32>
    %cst_6 = arith.constant 0.000000e+00 : f32
    %12 = vector.broadcast %cst_6 : f32 to vector<128x32xf32>
    %13 = arith.maximumf %11, %12 : vector<128x32xf32>
    %c16 = arith.constant 16 : index
    %c0_7 = arith.constant 0 : index
    %14 = vector.load %arg10[%c16, %c0_7] : memref<160x32xf32, #tpu.memory_space<vmem>>, vector<128x32xf32>
    tpu.vector_store %arg10[%c16, %c0_7], %13 {strides = array<i32>} : memref<160x32xf32, #tpu.memory_space<vmem>>, vector<128x32xf32>,
    %c0_i32 = arith.constant 0 : i32
    %15 = arith.cmpi eq, %arg1, %c0_i32 : i32
    %16 = arith.extui %15 : i1 to i32
    %c0_i32_8 = arith.constant 0 : i32
    %17 = arith.cmpi ne, %16, %c0_i32_8 : i32
    scf.if %17 {
      %cst_61 = arith.constant 0.000000e+00 : f32
      %101 = vector.broadcast %cst_61 : f32 to vector<16x32xf32>
      %c0_62 = arith.constant 0 : index
      %c0_63 = arith.constant 0 : index
      %102 = vector.load %arg10[%c0_62, %c0_63] : memref<160x32xf32, #tpu.memory_space<vmem>>, vector<16x32xf32>
      tpu.vector_store %arg10[%c0_62, %c0_63], %101 {strides = array<i32>} : memref<160x32xf32, #tpu.memory_space<vmem>>, vector<16x32xf32>,
    } else {
    }
    %c0_i32_9 = arith.constant 0 : i32
    %18 = arith.cmpi sgt, %arg1, %c0_i32_9 : i32
    %19 = arith.extui %18 : i1 to i32
    %c0_i32_10 = arith.constant 0 : i32
    %20 = arith.cmpi ne, %19, %c0_i32_10 : i32
    scf.if %20 {
      %c1_i32_61 = arith.constant 1 : i32
      %101 = arith.subi %1, %c1_i32_61 : i32
      %c0_62 = arith.constant 0 : index
      %102 = arith.index_cast %101 : i32 to index
      %c0_63 = arith.constant 0 : index
      %c0_64 = arith.constant 0 : index
      %103 = vector.load %arg2[%c0_62, %102, %c0_63, %c0_64] : memref<1x16x16x128xf32, #tpu.memory_space<vmem>>, vector<1x1x16x128xf32>
      %104 = vector.shape_cast %103 : vector<1x1x16x128xf32> to vector<1x16x128xf32>
      %105 = vector.shape_cast %104 : vector<1x16x128xf32> to vector<16x128xf32>
      %106 = arith.truncf %105 : vector<16x128xf32> to vector<16x128xbf16>
      %cst_65 = arith.constant dense<0.000000e+00> : vector<16x32xf32>
      %107 = tpu.matmul %106, %2, %cst_65 {dimension_numbers = #tpu.dot_dimension_numbers<[1], [0], [0], [1], [0, 0, 1, 1], [], []>} : vector<16x128xbf16>, vector<128x32xbf16>, vector<16x32xf32> -> vector<16x32xf32>
      %108 = vector.broadcast %3 : vector<1x32xf32> to vector<16x32xf32>
      %109 = arith.addf %107, %108 : vector<16x32xf32>
      %cst_66 = arith.constant 0.000000e+00 : f32
      %110 = vector.broadcast %cst_66 : f32 to vector<16x32xf32>
      %111 = arith.maximumf %109, %110 : vector<16x32xf32>
      %c0_67 = arith.constant 0 : index
      %c0_68 = arith.constant 0 : index
      %112 = vector.load %arg10[%c0_67, %c0_68] : memref<160x32xf32, #tpu.memory_space<vmem>>, vector<16x32xf32>
      tpu.vector_store %arg10[%c0_67, %c0_68], %111 {strides = array<i32>} : memref<160x32xf32, #tpu.memory_space<vmem>>, vector<16x32xf32>,
    } else {
    }
    %c1_i32 = arith.constant 1 : i32
    %21 = arith.cmpi eq, %arg1, %c1_i32 : i32
    %22 = arith.extui %21 : i1 to i32
    %c0_i32_11 = arith.constant 0 : i32
    %23 = arith.cmpi ne, %22, %c0_i32_11 : i32
    scf.if %23 {
      %cst_61 = arith.constant 0.000000e+00 : f32
      %101 = vector.broadcast %cst_61 : f32 to vector<16x32xf32>
      %c144 = arith.constant 144 : index
      %c0_62 = arith.constant 0 : index
      %102 = vector.load %arg10[%c144, %c0_62] : memref<160x32xf32, #tpu.memory_space<vmem>>, vector<16x32xf32>
      tpu.vector_store %arg10[%c144, %c0_62], %101 {strides = array<i32>} : memref<160x32xf32, #tpu.memory_space<vmem>>, vector<16x32xf32>,
    } else {
    }
    %c1_i32_12 = arith.constant 1 : i32
    %24 = arith.cmpi slt, %arg1, %c1_i32_12 : i32
    %25 = arith.extui %24 : i1 to i32
    %c0_i32_13 = arith.constant 0 : i32
    %26 = arith.cmpi ne, %25, %c0_i32_13 : i32
    scf.if %26 {
      %c8_i32_61 = arith.constant 8 : i32
      %101 = arith.addi %1, %c8_i32_61 : i32
      %c0_62 = arith.constant 0 : index
      %102 = arith.index_cast %101 : i32 to index
      %c0_63 = arith.constant 0 : index
      %c0_64 = arith.constant 0 : index
      %103 = vector.load %arg2[%c0_62, %102, %c0_63, %c0_64] : memref<1x16x16x128xf32, #tpu.memory_space<vmem>>, vector<1x1x16x128xf32>
      %104 = vector.shape_cast %103 : vector<1x1x16x128xf32> to vector<1x16x128xf32>
      %105 = vector.shape_cast %104 : vector<1x16x128xf32> to vector<16x128xf32>
      %106 = arith.truncf %105 : vector<16x128xf32> to vector<16x128xbf16>
      %cst_65 = arith.constant dense<0.000000e+00> : vector<16x32xf32>
      %107 = tpu.matmul %106, %2, %cst_65 {dimension_numbers = #tpu.dot_dimension_numbers<[1], [0], [0], [1], [0, 0, 1, 1], [], []>} : vector<16x128xbf16>, vector<128x32xbf16>, vector<16x32xf32> -> vector<16x32xf32>
      %108 = vector.broadcast %3 : vector<1x32xf32> to vector<16x32xf32>
      %109 = arith.addf %107, %108 : vector<16x32xf32>
      %cst_66 = arith.constant 0.000000e+00 : f32
      %110 = vector.broadcast %cst_66 : f32 to vector<16x32xf32>
      %111 = arith.maximumf %109, %110 : vector<16x32xf32>
      %c144 = arith.constant 144 : index
      %c0_67 = arith.constant 0 : index
      %112 = vector.load %arg10[%c144, %c0_67] : memref<160x32xf32, #tpu.memory_space<vmem>>, vector<16x32xf32>
      tpu.vector_store %arg10[%c144, %c0_67], %111 {strides = array<i32>} : memref<160x32xf32, #tpu.memory_space<vmem>>, vector<16x32xf32>,
    } else {
    }
    %c0_14 = arith.constant 0 : index
    %c0_15 = arith.constant 0 : index
    %27 = vector.load %arg10[%c0_14, %c0_15] : memref<160x32xf32, #tpu.memory_space<vmem>>, vector<160x32xf32>
    %28 = tpu.iota {dimensions = array<i32: 0>} : vector<160x1xi32>
    %c16_i32 = arith.constant 16 : i32
    %c0_i32_16 = arith.constant 0 : i32
    %29 = arith.cmpi eq, %c16_i32, %c0_i32_16 : i32
    %c1_i32_17 = arith.constant 1 : i32
    %30 = arith.select %29, %c1_i32_17, %c16_i32 : i32
    %31 = vector.broadcast %30 : i32 to vector<160x1xi32>
    %32 = arith.remsi %28, %31 : vector<160x1xi32>
    %c0_i32_18 = arith.constant 0 : i32
    %33 = vector.broadcast %c0_i32_18 : i32 to vector<160x1xi32>
    %34 = arith.cmpi ne, %32, %33 : vector<160x1xi32>
    %c0_i32_19 = arith.constant 0 : i32
    %35 = vector.broadcast %c0_i32_19 : i32 to vector<160x1xi32>
    %36 = arith.cmpi slt, %32, %35 : vector<160x1xi32>
    %c0_i32_20 = arith.constant 0 : i32
    %37 = arith.cmpi slt, %30, %c0_i32_20 : i32
    %38 = vector.broadcast %37 : i1 to vector<160x1xi1>
    %39 = vector.broadcast %38 : vector<160x1xi1> to vector<160x1xi1>
    %40 = arith.xori %36, %39 : vector<160x1xi1>
    %41 = arith.andi %40, %34 : vector<160x1xi1>
    %42 = vector.broadcast %30 : i32 to vector<160x1xi32>
    %43 = arith.addi %32, %42 : vector<160x1xi32>
    %44 = arith.select %41, %43, %32 : vector<160x1xi1>, vector<160x1xi32>
    %c1_i32_21 = arith.constant 1 : i32
    %45 = vector.broadcast %c1_i32_21 : i32 to vector<160x1xi32>
    %46 = arith.cmpi sge, %44, %45 : vector<160x1xi32>
    %c1_i32_22 = arith.constant 1 : i32
    %47 = tpu.dynamic_rotate %27 by %c1_i32_22 dim 0 : vector<160x32xf32>, i32 -> vector<160x32xf32>
    %cst_23 = arith.constant 0.000000e+00 : f32
    %48 = vector.shape_cast %46 : vector<160x1xi1> to vector<160x1xi1>
    %49 = vector.broadcast %48 : vector<160x1xi1> to vector<160x32xi1>
    %50 = vector.broadcast %cst_23 : f32 to vector<160x32xf32>
    %51 = arith.select %49, %47, %50 : vector<160x32xi1>, vector<160x32xf32>
    %c14_i32 = arith.constant 14 : i32
    %52 = vector.broadcast %c14_i32 : i32 to vector<160x1xi32>
    %53 = arith.cmpi sle, %44, %52 : vector<160x1xi32>
    %c159_i32 = arith.constant 159 : i32
    %54 = tpu.dynamic_rotate %27 by %c159_i32 dim 0 : vector<160x32xf32>, i32 -> vector<160x32xf32>
    %cst_24 = arith.constant 0.000000e+00 : f32
    %55 = vector.shape_cast %53 : vector<160x1xi1> to vector<160x1xi1>
    %56 = vector.broadcast %55 : vector<160x1xi1> to vector<160x32xi1>
    %57 = vector.broadcast %cst_24 : f32 to vector<160x32xf32>
    %58 = arith.select %56, %54, %57 : vector<160x32xi1>, vector<160x32xf32>
    %59 = arith.truncf %51 : vector<160x32xf32> to vector<160x32xbf16>
    %c0_25 = arith.constant 0 : index
    %c0_26 = arith.constant 0 : index
    %60 = vector.load %arg11[%c0_25, %c0_26] : memref<160x96xbf16, #tpu.memory_space<vmem>>, vector<160x32xbf16>
    tpu.vector_store %arg11[%c0_25, %c0_26], %59 {strides = array<i32>} : memref<160x96xbf16, #tpu.memory_space<vmem>>, vector<160x32xbf16>,
    %61 = arith.truncf %27 : vector<160x32xf32> to vector<160x32xbf16>
    %c0_27 = arith.constant 0 : index
    %c32 = arith.constant 32 : index
    %62 = vector.load %arg11[%c0_27, %c32] : memref<160x96xbf16, #tpu.memory_space<vmem>>, vector<160x32xbf16>
    tpu.vector_store %arg11[%c0_27, %c32], %61 {strides = array<i32>} : memref<160x96xbf16, #tpu.memory_space<vmem>>, vector<160x32xbf16>,
    %63 = arith.truncf %58 : vector<160x32xf32> to vector<160x32xbf16>
    %c0_28 = arith.constant 0 : index
    %c64 = arith.constant 64 : index
    %64 = vector.load %arg11[%c0_28, %c64] : memref<160x96xbf16, #tpu.memory_space<vmem>>, vector<160x32xbf16>
    tpu.vector_store %arg11[%c0_28, %c64], %63 {strides = array<i32>} : memref<160x96xbf16, #tpu.memory_space<vmem>>, vector<160x32xbf16>,
    %c0_29 = arith.constant 0 : index
    %c0_30 = arith.constant 0 : index
    %65 = vector.load %arg11[%c0_29, %c0_30] : memref<160x96xbf16, #tpu.memory_space<vmem>>, vector<128x96xbf16>
    %c0_31 = arith.constant 0 : index
    %c0_32 = arith.constant 0 : index
    %c0_33 = arith.constant 0 : index
    %66 = vector.load %arg5[%c0_31, %c0_32, %c0_33] : memref<3x96x32xbf16, #tpu.memory_space<vmem>>, vector<1x96x32xbf16>
    %67 = vector.shape_cast %66 : vector<1x96x32xbf16> to vector<96x32xbf16>
    %cst_34 = arith.constant dense<0.000000e+00> : vector<128x32xf32>
    %68 = tpu.matmul %65, %67, %cst_34 {dimension_numbers = #tpu.dot_dimension_numbers<[1], [0], [0], [1], [0, 0, 1, 1], [], []>} : vector<128x96xbf16>, vector<96x32xbf16>, vector<128x32xf32> -> vector<128x32xf32>
    %c16_35 = arith.constant 16 : index
    %c0_36 = arith.constant 0 : index
    %69 = vector.load %arg11[%c16_35, %c0_36] : memref<160x96xbf16, #tpu.memory_space<vmem>>, vector<128x96xbf16>
    %c1 = arith.constant 1 : index
    %c0_37 = arith.constant 0 : index
    %c0_38 = arith.constant 0 : index
    %70 = vector.load %arg5[%c1, %c0_37, %c0_38] : memref<3x96x32xbf16, #tpu.memory_space<vmem>>, vector<1x96x32xbf16>
    %71 = vector.shape_cast %70 : vector<1x96x32xbf16> to vector<96x32xbf16>
    %cst_39 = arith.constant dense<0.000000e+00> : vector<128x32xf32>
    %72 = tpu.matmul %69, %71, %cst_39 {dimension_numbers = #tpu.dot_dimension_numbers<[1], [0], [0], [1], [0, 0, 1, 1], [], []>} : vector<128x96xbf16>, vector<96x32xbf16>, vector<128x32xf32> -> vector<128x32xf32>
    %73 = arith.addf %68, %72 : vector<128x32xf32>
    %c32_40 = arith.constant 32 : index
    %c0_41 = arith.constant 0 : index
    %74 = vector.load %arg11[%c32_40, %c0_41] : memref<160x96xbf16, #tpu.memory_space<vmem>>, vector<128x96xbf16>
    %c2 = arith.constant 2 : index
    %c0_42 = arith.constant 0 : index
    %c0_43 = arith.constant 0 : index
    %75 = vector.load %arg5[%c2, %c0_42, %c0_43] : memref<3x96x32xbf16, #tpu.memory_space<vmem>>, vector<1x96x32xbf16>
    %76 = vector.shape_cast %75 : vector<1x96x32xbf16> to vector<96x32xbf16>
    %cst_44 = arith.constant dense<0.000000e+00> : vector<128x32xf32>
    %77 = tpu.matmul %74, %76, %cst_44 {dimension_numbers = #tpu.dot_dimension_numbers<[1], [0], [0], [1], [0, 0, 1, 1], [], []>} : vector<128x96xbf16>, vector<96x32xbf16>, vector<128x32xf32> -> vector<128x32xf32>
    %78 = arith.addf %73, %77 : vector<128x32xf32>
    %c0_45 = arith.constant 0 : index
    %c0_46 = arith.constant 0 : index
    %79 = vector.load %arg6[%c0_45, %c0_46] : memref<1x32xf32, #tpu.memory_space<vmem>>, vector<1x32xf32>
    %80 = vector.broadcast %79 : vector<1x32xf32> to vector<128x32xf32>
    %81 = arith.addf %78, %80 : vector<128x32xf32>
    %cst_47 = arith.constant 0.000000e+00 : f32
    %82 = vector.broadcast %cst_47 : f32 to vector<128x32xf32>
    %83 = arith.maximumf %81, %82 : vector<128x32xf32>
    %84 = arith.truncf %83 : vector<128x32xf32> to vector<128x32xbf16>
    %c0_48 = arith.constant 0 : index
    %c0_49 = arith.constant 0 : index
    %85 = vector.load %arg7[%c0_48, %c0_49] : memref<32x128xbf16, #tpu.memory_space<vmem>>, vector<32x128xbf16>
    %cst_50 = arith.constant dense<0.000000e+00> : vector<128x128xf32>
    %86 = tpu.matmul %84, %85, %cst_50 {dimension_numbers = #tpu.dot_dimension_numbers<[1], [0], [0], [1], [0, 0, 1, 1], [], []>} : vector<128x32xbf16>, vector<32x128xbf16>, vector<128x128xf32> -> vector<128x128xf32>
    %c0_51 = arith.constant 0 : index
    %87 = arith.index_cast %1 : i32 to index
    %c0_52 = arith.constant 0 : index
    %c0_53 = arith.constant 0 : index
    %88 = vector.load %arg2[%c0_51, %87, %c0_52, %c0_53] : memref<1x16x16x128xf32, #tpu.memory_space<vmem>>, vector<1x8x16x128xf32>
    %89 = vector.shape_cast %88 : vector<1x8x16x128xf32> to vector<8x16x128xf32>
    %90 = vector.shape_cast %89 : vector<8x16x128xf32> to vector<128x128xf32>
    %c0_54 = arith.constant 0 : index
    %c0_55 = arith.constant 0 : index
    %91 = vector.load %arg8[%c0_54, %c0_55] : memref<1x128xf32, #tpu.memory_space<vmem>>, vector<1x128xf32>
    %92 = vector.broadcast %91 : vector<1x128xf32> to vector<128x128xf32>
    %93 = arith.addf %86, %92 : vector<128x128xf32>
    %94 = arith.addf %93, %90 : vector<128x128xf32>
    %cst_56 = arith.constant 0.000000e+00 : f32
    %95 = vector.broadcast %cst_56 : f32 to vector<128x128xf32>
    %96 = arith.maximumf %94, %95 : vector<128x128xf32>
    %97 = vector.shape_cast %96 : vector<128x128xf32> to vector<8x16x128xf32>
    %c0_57 = arith.constant 0 : index
    %c0_58 = arith.constant 0 : index
    %c0_59 = arith.constant 0 : index
    %c0_60 = arith.constant 0 : index
    %98 = vector.load %arg9[%c0_57, %c0_58, %c0_59, %c0_60] : memref<1x8x16x128xf32, #tpu.memory_space<vmem>>, vector<1x8x16x128xf32>
    %99 = vector.shape_cast %98 : vector<1x8x16x128xf32> to vector<8x16x128xf32>
    %100 = vector.shape_cast %97 : vector<8x16x128xf32> to vector<1x8x16x128xf32>
    tpu.vector_store %arg9[%c0_57, %c0_58, %c0_59, %c0_60], %100 {strides = array<i32>} : memref<1x8x16x128xf32, #tpu.memory_space<vmem>>, vector<1x8x16x128xf32>,
    return
  }
  func.func @transform_0(%arg0: i32, %arg1: i32) -> (i32, i32, i32, i32) {
    %c0_i32 = arith.constant 0 : i32
    %c0_i32_0 = arith.constant 0 : i32
    %c0_i32_1 = arith.constant 0 : i32
    %c0_i32_2 = arith.constant 0 : i32
    return %arg0, %c0_i32, %c0_i32_0, %c0_i32_1 : i32, i32, i32, i32
  }
  func.func @transform_1(%arg0: i32, %arg1: i32) -> (i32, i32) {
    %c0_i32 = arith.constant 0 : i32
    %c0_i32_0 = arith.constant 0 : i32
    %c0_i32_1 = arith.constant 0 : i32
    return %c0_i32, %c0_i32_0 : i32, i32
  }
  func.func @transform_2(%arg0: i32, %arg1: i32) -> (i32, i32) {
    %c0_i32 = arith.constant 0 : i32
    %c0_i32_0 = arith.constant 0 : i32
    %c0_i32_1 = arith.constant 0 : i32
    return %c0_i32, %c0_i32_0 : i32, i32
  }
  func.func @transform_3(%arg0: i32, %arg1: i32) -> (i32, i32, i32) {
    %c0_i32 = arith.constant 0 : i32
    %c0_i32_0 = arith.constant 0 : i32
    %c0_i32_1 = arith.constant 0 : i32
    %c0_i32_2 = arith.constant 0 : i32
    return %c0_i32, %c0_i32_0, %c0_i32_1 : i32, i32, i32
  }
  func.func @transform_4(%arg0: i32, %arg1: i32) -> (i32, i32) {
    %c0_i32 = arith.constant 0 : i32
    %c0_i32_0 = arith.constant 0 : i32
    %c0_i32_1 = arith.constant 0 : i32
    return %c0_i32, %c0_i32_0 : i32, i32
  }
  func.func @transform_5(%arg0: i32, %arg1: i32) -> (i32, i32) {
    %c0_i32 = arith.constant 0 : i32
    %c0_i32_0 = arith.constant 0 : i32
    %c0_i32_1 = arith.constant 0 : i32
    return %c0_i32, %c0_i32_0 : i32, i32
  }
  func.func @transform_6(%arg0: i32, %arg1: i32) -> (i32, i32) {
    %c0_i32 = arith.constant 0 : i32
    %c0_i32_0 = arith.constant 0 : i32
    %c0_i32_1 = arith.constant 0 : i32
    return %c0_i32, %c0_i32_0 : i32, i32
  }
  func.func @transform_7(%arg0: i32, %arg1: i32) -> (i32, i32, i32, i32) {
    %c0_i32 = arith.constant 0 : i32
    %c0_i32_0 = arith.constant 0 : i32
    %c0_i32_1 = arith.constant 0 : i32
    return %arg0, %arg1, %c0_i32, %c0_i32_0 : i32, i32, i32, i32
  }
}

</mosaic_0001>

<llo_original>
// kernel: tpu_custom_call.1
$region0: #{tpu_custom_call.1}
  #allocation0 [shape = 'u32[]', space=smem, size = 0x4, offset = 0x4, fixed_abs, tag = 'smem constant byte address 0x4 - core index']
  #allocation1 [shape = 'u32[144,128]{1,0:T(1,128)}', space=vmem, size = 0x12000, scoped, tag = 'internal scratch']
  #allocation2 [shape = 'f32[160,32]{1,0:T(8,128)}', space=vmem, size = 0x14000, scoped, tag = 'scratch operand']
  #allocation3 [shape = 'bf16[160,96]{1,0:T(16,128)(2,1)}', space=vmem, size = 0xa000, scoped, tag = 'scratch operand']
  %s0 = inlined_call_operand.hbm [shape: f32[2,16,16,128], index: 0, kind: input, shape index: {}]
  %s1 = inlined_call_operand.vmem [shape: bf16[128,32], index: 1, kind: input, shape index: {}]
  %s2 = inlined_call_operand.vmem [shape: f32[1,32], index: 2, kind: input, shape index: {}]
  %s3 = inlined_call_operand.vmem [shape: bf16[3,96,32], index: 3, kind: input, shape index: {}]
  %s4 = inlined_call_operand.vmem [shape: f32[1,32], index: 4, kind: input, shape index: {}]
  %s5 = inlined_call_operand.vmem [shape: bf16[32,128], index: 5, kind: input, shape index: {}]
  %s6 = inlined_call_operand.vmem [shape: f32[1,128], index: 6, kind: input, shape index: {}]
  %s7 = inlined_call_operand.hbm [shape: f32[2,16,16,128], index: 7, kind: output, shape index: {}]
  %s8 = sld [smem:[#allocation0]]
  $region81: #{tpu_custom_call.1} parent=0
    _
  %s10 = ssub.s32 1, %s8
  %s11 = scalar_select 0, %s10, %s8
  $region1: #{tpu_custom_call.1} parent=0
    #allocation4 [shape = 'u8[262144]{0}', space=vmem, size = 0x40000, scoped, tag = 'input window, operand 0']
    #allocation5 [shape = 's32[2]{0}', space=sflag, size = 0x8, scoped, tag = 'scoped memory for tpu_custom_call.1']
    #allocation6 [shape = 's32[2]{0}', space=sflag, size = 0x8, scoped, tag = 'scoped memory for tpu_custom_call.1']
    #allocation7 [shape = 'u8[131072]{0}', space=vmem, size = 0x20000, scoped, tag = 'output window, operand 0']
    %12 = vsyncpa [#allocation5], 0
    %s13 = scalar_lea.sflag [#allocation5], 1
    %14 = vsyncpa %s13, 0
    %15 = vsyncpa [#allocation6], 0
    %s16 = scalar_lea.sflag [#allocation6], 1
    %17 = vsyncpa %s16, 0
    loop: start=0, step=1, limit=6
    $region2: #{tpu_custom_call.1} parent=1 // loop_pre_header
      _
    $region3: #{tpu_custom_call.1} parent=1 // loop_header
      %s19 = sphi 0, %s23
      %p20 = scmp.ge.s32.totalorder %s19, 6
      %s26 = sphi 0, %s38
      %s27 = sphi 0, %s34
      %s28 = sphi 0, %s26
      %s29 = sphi 0, %s27
      %s30 = sphi 0, %s28
      %s31 = sphi 0, %s29
      %s41 = sphi 0, %s43
      %s44 = sphi 0, %s41
      %s45 = sphi 0, %s44
      %s61 = sphi 0, %s45
      %s65 = sphi 0, %s65
      %s67 = sphi 0, %s65
      %s68 = sphi 0, %s67
      %s82 = sphi 0, %s68
      %s86 = sphi 0, %s86
      %s88 = sphi 0, %s86
      %s89 = sphi 0, %s88
      %s103 = sphi 0, %s89
      %s107 = sphi 0, %s107
      %s109 = sphi 0, %s107
      %s110 = sphi 0, %s109
      %s124 = sphi 0, %s110
      %s128 = sphi 0, %s128
      %s130 = sphi 0, %s128
      %s131 = sphi 0, %s130
      %s145 = sphi 0, %s131
      %s149 = sphi 0, %s149
      %s151 = sphi 0, %s149
      %s152 = sphi 0, %s151
      %s166 = sphi 0, %s152
      %s170 = sphi 0, %s170
      %s172 = sphi 0, %s170
      %s173 = sphi 0, %s172
      %s187 = sphi 0, %s173
      %s195 = sphi 0, %s197
      %s198 = sphi 0, %s195
      %s199 = sphi 0, %s198
      %s215 = sphi 0, %s199
    $region4: #{tpu_custom_call.1} parent=1 // loop_header_branch
      %22 = sbr.rel (%p20) target = $region8
    $region5: #{tpu_custom_call.1} parent=1 // loop_body
      %s24 = ssub.s32 %s19, 1
      %s25 = ssub.s32 %s19, 2
      %s32 = sadd.s32 1, %s27
      %p33 = scmp.ge.s32.totalorder %s32, 2
      %s34 = scalar_select %p33, 0, %s32
      %s35 = sadd.s32 1, %s26
      %s36 = scalar_select %p33, %s35, %s26
      %p37 = scmp.ge.s32.totalorder %s36, 2
      %s38 = scalar_select %p37, 0, %s36
      %s39 = ssub.s32 %s26, %s38
      %p40 = scmp.eq.s32.totalorder %s39, 0
      %s42 = sadd.s32 %s41, 1
      %s43 = scalar_select %p40, %s41, %s42
      %p46 = pneg %p40
      %p47 = scmp.eq.s32.totalorder %s19, 3
      %p48 = por %p46, %p47
      %p49 = scmp.ne.s32.totalorder %s41, %s44
      %p50 = scmp.eq.s32.totalorder %s19, 0
      %p51 = por %p49, %p50
      %p52 = scmp.ne.s32.totalorder %s41, %s44
      %p53 = scmp.eq.s32.totalorder %s24, 3
      %p54 = por %p52, %p53
      %p55 = scmp.ne.s32.totalorder %s44, %s45
      %p56 = scmp.eq.s32.totalorder %s24, 0
      %p57 = por %p55, %p56
      %p58 = scmp.ne.s32.totalorder %s44, %s45
      %p59 = scmp.eq.s32.totalorder %s25, 3
      %p60 = por %p58, %p59
      %p62 = scmp.ne.s32.totalorder %s45, %s61
      %p63 = scmp.eq.s32.totalorder %s25, 0
      %p64 = por %p62, %p63
      %s66 = sadd.s32 %s65, 1
      %p69 = scmp.eq.s32.totalorder %s19, 3
      %p70 = scmp.ne.s32.totalorder %s65, %s67
      %p71 = scmp.eq.s32.totalorder %s19, 0
      %p72 = por %p70, %p71
      %p73 = scmp.ne.s32.totalorder %s65, %s67
      %p74 = scmp.eq.s32.totalorder %s24, 3
      %p75 = por %p73, %p74
      %p76 = scmp.ne.s32.totalorder %s67, %s68
      %p77 = scmp.eq.s32.totalorder %s24, 0
      %p78 = por %p76, %p77
      %p79 = scmp.ne.s32.totalorder %s67, %s68
      %p80 = scmp.eq.s32.totalorder %s25, 3
      %p81 = por %p79, %p80
      %p83 = scmp.ne.s32.totalorder %s68, %s82
      %p84 = scmp.eq.s32.totalorder %s25, 0
      %p85 = por %p83, %p84
      %s87 = sadd.s32 %s86, 1
      %p90 = scmp.eq.s32.totalorder %s19, 3
      %p91 = scmp.ne.s32.totalorder %s86, %s88
      %p92 = scmp.eq.s32.totalorder %s19, 0
      %p93 = por %p91, %p92
      %p94 = scmp.ne.s32.totalorder %s86, %s88
      %p95 = scmp.eq.s32.totalorder %s24, 3
      %p96 = por %p94, %p95
      %p97 = scmp.ne.s32.totalorder %s88, %s89
      %p98 = scmp.eq.s32.totalorder %s24, 0
      %p99 = por %p97, %p98
      %p100 = scmp.ne.s32.totalorder %s88, %s89
      %p101 = scmp.eq.s32.totalorder %s25, 3
      %p102 = por %p100, %p101
      %p104 = scmp.ne.s32.totalorder %s89, %s103
      %p105 = scmp.eq.s32.totalorder %s25, 0
      %p106 = por %p104, %p105
      %s108 = sadd.s32 %s107, 1
      %p111 = scmp.eq.s32.totalorder %s19, 3
      %p112 = scmp.ne.s32.totalorder %s107, %s109
      %p113 = scmp.eq.s32.totalorder %s19, 0
      %p114 = por %p112, %p113
      %p115 = scmp.ne.s32.totalorder %s107, %s109
      %p116 = scmp.eq.s32.totalorder %s24, 3
      %p117 = por %p115, %p116
      %p118 = scmp.ne.s32.totalorder %s109, %s110
      %p119 = scmp.eq.s32.totalorder %s24, 0
      %p120 = por %p118, %p119
      %p121 = scmp.ne.s32.totalorder %s109, %s110
      %p122 = scmp.eq.s32.totalorder %s25, 3
      %p123 = por %p121, %p122
      %p125 = scmp.ne.s32.totalorder %s110, %s124
      %p126 = scmp.eq.s32.totalorder %s25, 0
      %p127 = por %p125, %p126
      %s129 = sadd.s32 %s128, 1
      %p132 = scmp.eq.s32.totalorder %s19, 3
      %p133 = scmp.ne.s32.totalorder %s128, %s130
      %p134 = scmp.eq.s32.totalorder %s19, 0
      %p135 = por %p133, %p134
      %p136 = scmp.ne.s32.totalorder %s128, %s130
      %p137 = scmp.eq.s32.totalorder %s24, 3
      %p138 = por %p136, %p137
      %p139 = scmp.ne.s32.totalorder %s130, %s131
      %p140 = scmp.eq.s32.totalorder %s24, 0
      %p141 = por %p139, %p140
      %p142 = scmp.ne.s32.totalorder %s130, %s131
      %p143 = scmp.eq.s32.totalorder %s25, 3
      %p144 = por %p142, %p143
      %p146 = scmp.ne.s32.totalorder %s131, %s145
      %p147 = scmp.eq.s32.totalorder %s25, 0
      %p148 = por %p146, %p147
      %s150 = sadd.s32 %s149, 1
      %p153 = scmp.eq.s32.totalorder %s19, 3
      %p154 = scmp.ne.s32.totalorder %s149, %s151
      %p155 = scmp.eq.s32.totalorder %s19, 0
      %p156 = por %p154, %p155
      %p157 = scmp.ne.s32.totalorder %s149, %s151
      %p158 = scmp.eq.s32.totalorder %s24, 3
      %p159 = por %p157, %p158
      %p160 = scmp.ne.s32.totalorder %s151, %s152
      %p161 = scmp.eq.s32.totalorder %s24, 0
      %p162 = por %p160, %p161
      %p163 = scmp.ne.s32.totalorder %s151, %s152
      %p164 = scmp.eq.s32.totalorder %s25, 3
      %p165 = por %p163, %p164
      %p167 = scmp.ne.s32.totalorder %s152, %s166
      %p168 = scmp.eq.s32.totalorder %s25, 0
      %p169 = por %p167, %p168
      %s171 = sadd.s32 %s170, 1
      %p174 = scmp.eq.s32.totalorder %s19, 3
      %p175 = scmp.ne.s32.totalorder %s170, %s172
      %p176 = scmp.eq.s32.totalorder %s19, 0
      %p177 = por %p175, %p176
      %p178 = scmp.ne.s32.totalorder %s170, %s172
      %p179 = scmp.eq.s32.totalorder %s24, 3
      %p180 = por %p178, %p179
      %p181 = scmp.ne.s32.totalorder %s172, %s173
      %p182 = scmp.eq.s32.totalorder %s24, 0
      %p183 = por %p181, %p182
      %p184 = scmp.ne.s32.totalorder %s172, %s173
      %p185 = scmp.eq.s32.totalorder %s25, 3
      %p186 = por %p184, %p185
      %p188 = scmp.ne.s32.totalorder %s173, %s187
      %p189 = scmp.eq.s32.totalorder %s25, 0
      %p190 = por %p188, %p189
      %s191 = ssub.s32 %s26, %s38
      %s192 = ssub.s32 %s27, %s34
      %s193 = sor.u32 %s191, %s192
      %p194 = scmp.eq.s32.totalorder %s193, 0
      %s196 = sadd.s32 %s195, 1
      %s197 = scalar_select %p194, %s195, %s196
      %p200 = pneg %p194
      %p201 = scmp.eq.s32.totalorder %s19, 3
      %p202 = por %p200, %p201
      %p203 = scmp.ne.s32.totalorder %s195, %s198
      %p204 = scmp.eq.s32.totalorder %s19, 0
      %p205 = por %p203, %p204
      %p206 = scmp.ne.s32.totalorder %s195, %s198
      %p207 = scmp.eq.s32.totalorder %s24, 3
      %p208 = por %p206, %p207
      %p209 = scmp.ne.s32.totalorder %s198, %s199
      %p210 = scmp.eq.s32.totalorder %s24, 0
      %p211 = por %p209, %p210
      %p212 = scmp.ne.s32.totalorder %s198, %s199
      %p213 = scmp.eq.s32.totalorder %s25, 3
      %p214 = por %p212, %p213
      %p216 = scmp.ne.s32.totalorder %s199, %s215
      %p217 = scmp.eq.s32.totalorder %s25, 0
      %p218 = por %p216, %p217
      %p219 = scmp.le.s32.totalorder 1, %s19
      %p220 = scmp.lt.s32.totalorder %s19, 5
      %p221 = pnand %p219, %p220
      %p222 = pneg %p221
      // Predicated region
      $region9: #{tpu_custom_call.1} parent=5 // pred_check
        _
      $region10: #{tpu_custom_call.1} parent=5 // pred_check_branch
        %224 = sbr.rel (%p221) target = $region12
      $region11: #{tpu_custom_call.1} parent=5 // pred_region
        %s225 = ssub.s32 %s19, 1
        // Predicated region
        $region13: #{tpu_custom_call.1} parent=11 // pred_check
          %p226 = pneg %p78
        $region14: #{tpu_custom_call.1} parent=11 // pred_check_branch
          %228 = sbr.rel (%p226) target = $region16
        $region15: #{tpu_custom_call.1} parent=11 // pred_region
          _
        $region16: #{tpu_custom_call.1} parent=11 // pred_fallthru
          _
        // Predicated region
        $region17: #{tpu_custom_call.1} parent=11 // pred_check
          %p229 = pneg %p99
        $region18: #{tpu_custom_call.1} parent=11 // pred_check_branch
          %231 = sbr.rel (%p229) target = $region20
        $region19: #{tpu_custom_call.1} parent=11 // pred_region
          _
        $region20: #{tpu_custom_call.1} parent=11 // pred_fallthru
          _
        // Predicated region
        $region21: #{tpu_custom_call.1} parent=11 // pred_check
          %p232 = pneg %p120
        $region22: #{tpu_custom_call.1} parent=11 // pred_check_branch
          %234 = sbr.rel (%p232) target = $region24
        $region23: #{tpu_custom_call.1} parent=11 // pred_region
          _
        $region24: #{tpu_custom_call.1} parent=11 // pred_fallthru
          _
        // Predicated region
        $region25: #{tpu_custom_call.1} parent=11 // pred_check
          %p235 = pneg %p141
        $region26: #{tpu_custom_call.1} parent=11 // pred_check_branch
          %237 = sbr.rel (%p235) target = $region28
        $region27: #{tpu_custom_call.1} parent=11 // pred_region
          _
        $region28: #{tpu_custom_call.1} parent=11 // pred_fallthru
          _
        // Predicated region
        $region29: #{tpu_custom_call.1} parent=11 // pred_check
          %p238 = pneg %p162
        $region30: #{tpu_custom_call.1} parent=11 // pred_check_branch
          %240 = sbr.rel (%p238) target = $region32
        $region31: #{tpu_custom_call.1} parent=11 // pred_region
          _
        $region32: #{tpu_custom_call.1} parent=11 // pred_fallthru
          _
        // Predicated region
        $region33: #{tpu_custom_call.1} parent=11 // pred_check
          %p241 = pneg %p183
        $region34: #{tpu_custom_call.1} parent=11 // pred_check_branch
          %243 = sbr.rel (%p241) target = $region36
        $region35: #{tpu_custom_call.1} parent=11 // pred_region
          _
        $region36: #{tpu_custom_call.1} parent=11 // pred_fallthru
          _
      $region12: #{tpu_custom_call.1} parent=5 // pred_fallthru
        _
      %p244 = scmp.lt.s32.totalorder %s19, 4
      // Predicated region
      $region37: #{tpu_custom_call.1} parent=5 // pred_check
        %p245 = pneg %p244
      $region38: #{tpu_custom_call.1} parent=5 // pred_check_branch
        %247 = sbr.rel (%p245) target = $region40
      $region39: #{tpu_custom_call.1} parent=5 // pred_region
        // Predicated region
        $region41: #{tpu_custom_call.1} parent=39 // pred_check
          %p248 = pneg %p51
        $region42: #{tpu_custom_call.1} parent=39 // pred_check_branch
          %250 = sbr.rel (%p248) target = $region44
        $region43: #{tpu_custom_call.1} parent=39 // pred_region
          %s251 = sand.u32 %s41, 1
          %s252 = scalar_lea.sflag [#allocation5], %s251
          %s253 = sand.u32 %s41, 1
          %s254 = smul.addr %s253, 256
          %s255 = scalar_lea.vmem [#allocation4], %s254
          %s257 = ssub.s32 4096, 4096
          %258 = vsyncadd %s252, %s257
          %s259 = smul.addr %s26, 32
          %s260 = smul.addr %s259, 128
          %s261 = scalar_lea.hbm %s0, %s260
          %s262 = sshll.u32 %s255, 4
          %s263 = int_to_ptr.vmem [resolvable:$true] %s262
          %268 = dma.hbm_to_vmem [thread:$0]  %s261, 4096, %s263, %s252, 128, 128, 8
        $region44: #{tpu_custom_call.1} parent=39 // pred_fallthru
          _
      $region40: #{tpu_custom_call.1} parent=5 // pred_fallthru
        _
      %p269 = scmp.le.s32.totalorder 1, %s19
      %p270 = scmp.lt.s32.totalorder %s19, 5
      %p271 = pnand %p269, %p270
      %p272 = pneg %p271
      // Predicated region
      $region45: #{tpu_custom_call.1} parent=5 // pred_check
        _
      $region46: #{tpu_custom_call.1} parent=5 // pred_check_branch
        %274 = sbr.rel (%p271) target = $region48
      $region47: #{tpu_custom_call.1} parent=5 // pred_region
        %s275 = ssub.s32 %s19, 1
        %s276 = sand.u32 %s44, 1
        %s277 = scalar_lea.sflag [#allocation5], %s276
        %s278 = sand.u32 %s44, 1
        %s279 = smul.addr %s278, 256
        %s280 = scalar_lea.vmem [#allocation4], %s279
        // Predicated region
        $region49: #{tpu_custom_call.1} parent=47 // pred_check
          %p281 = pneg %p57
        $region50: #{tpu_custom_call.1} parent=47 // pred_check_branch
          %283 = sbr.rel (%p281) target = $region52
        $region51: #{tpu_custom_call.1} parent=47 // pred_region
          %284 = dma.done %s277, 4096
        $region52: #{tpu_custom_call.1} parent=47 // pred_fallthru
          _
        %s285 = sand.u32 %s44, 1
        %s286 = scalar_lea.sflag [#allocation5], %s285
        %s287 = sand.u32 %s44, 1
        %s288 = smul.addr %s287, 256
        %s289 = scalar_lea.vmem [#allocation4], %s288
        %p290 = pneg %p57
        %p291 = pneg %p54
        %p292 = pneg %p78
        %p293 = pneg %p75
        %p294 = pneg %p99
        %p295 = pneg %p96
        %p296 = pneg %p120
        %p297 = pneg %p117
        %p298 = pneg %p141
        %p299 = pneg %p138
        %p300 = pneg %p162
        %p301 = pneg %p159
        %p302 = pneg %p183
        %p303 = pneg %p180
        %p304 = pneg %p211
        %p305 = pneg %p208
        %s306 = sand.u32 %s198, 1
        %s307 = scalar_lea.sflag [#allocation6], %s306
        %s308 = sand.u32 %s198, 1
        %s309 = smul.addr %s308, 128
        %s310 = scalar_lea.vmem [#allocation7], %s309
        %s311 = smul.u32 8, %s29
        %s313 = smul.u32 %s29, 8
        %v314 = vld [vmem:[%s1] sm:$0xf]
        %v315 = vld [vmem:[%s1 + $0x4] sm:$0xf]
        %v316 = vld [vmem:[%s1 + $0x8] sm:$0xf]
        %v317 = vld [vmem:[%s1 + $0xc] sm:$0xf]
        %v318 = vld [vmem:[%s1 + $0x10] sm:$0xf]
        %v319 = vld [vmem:[%s1 + $0x14] sm:$0xf]
        %v320 = vld [vmem:[%s1 + $0x18] sm:$0xf]
        %v321 = vld [vmem:[%s1 + $0x1c] sm:$0xf]
        %v322 = vld [vmem:[%s1 + $0x20] sm:$0xf]
        %v323 = vld [vmem:[%s1 + $0x24] sm:$0xf]
        %v324 = vld [vmem:[%s1 + $0x28] sm:$0xf]
        %v325 = vld [vmem:[%s1 + $0x2c] sm:$0xf]
        %v326 = vld [vmem:[%s1 + $0x30] sm:$0xf]
        %v327 = vld [vmem:[%s1 + $0x34] sm:$0xf]
        %v328 = vld [vmem:[%s1 + $0x38] sm:$0xf]
        %v329 = vld [vmem:[%s1 + $0x3c] sm:$0xf]
        %v330 = vld [vmem:[%s2] sm:$0x1]
        %s331 = smul.u32 %s313, 16
        %s332 = scalar_lea.vmem %s280, %s331 [#allocation4]
        %v333 = vld [vmem:[%s332] sm:$0xff]
        %v334 = vld [vmem:[%s332 + $0x8] sm:$0xff]
        %v335 = vld [vmem:[%s332 + $0x10] sm:$0xff]
        %v336 = vld [vmem:[%s332 + $0x18] sm:$0xff]
        %v337 = vld [vmem:[%s332 + $0x20] sm:$0xff]
        %v338 = vld [vmem:[%s332 + $0x28] sm:$0xff]
        %v339 = vld [vmem:[%s332 + $0x30] sm:$0xff]
        %v340 = vld [vmem:[%s332 + $0x38] sm:$0xff]
        %v341 = vld [vmem:[%s332 + $0x40] sm:$0xff]
        %v342 = vld [vmem:[%s332 + $0x48] sm:$0xff]
        %v343 = vld [vmem:[%s332 + $0x50] sm:$0xff]
        %v344 = vld [vmem:[%s332 + $0x58] sm:$0xff]
        %v345 = vld [vmem:[%s332 + $0x60] sm:$0xff]
        %v346 = vld [vmem:[%s332 + $0x68] sm:$0xff]
        %v347 = vld [vmem:[%s332 + $0x70] sm:$0xff]
        %v348 = vld [vmem:[%s332 + $0x78] sm:$0xff]
        %v349 = vpack.c.bf16 %v334, %v333
        %v350 = vpack.c.bf16 %v336, %v335
        %v351 = vpack.c.bf16 %v338, %v337
        %v352 = vpack.c.bf16 %v340, %v339
        %v353 = vpack.c.bf16 %v342, %v341
        %v354 = vpack.c.bf16 %v344, %v343
        %v355 = vpack.c.bf16 %v346, %v345
        %v356 = vpack.c.bf16 %v348, %v347
        %v358 = vlaneseq
        %v359 = vshrl.u32 %v358, 7
        %v360 = vsub.s32 0, %v359
        %v361 = vrot.slane %v330, %v360
        %v379 = vunpack.c.l.b16 %v314
        %v380 = vunpack.c.l.b16 %v315
        %v381 = vunpack.c.l.b16 %v316
        %v382 = vunpack.c.l.b16 %v317
        %v383 = vunpack.c.l.b16 %v318
        %v384 = vunpack.c.l.b16 %v319
        %v385 = vunpack.c.l.b16 %v320
        %v386 = vunpack.c.l.b16 %v321
        %v387 = vunpack.c.l.b16 %v322
        %v388 = vunpack.c.l.b16 %v323
        %v389 = vunpack.c.l.b16 %v324
        %v390 = vunpack.c.l.b16 %v325
        %v391 = vunpack.c.l.b16 %v326
        %v392 = vunpack.c.l.b16 %v327
        %v393 = vunpack.c.l.b16 %v328
        %v394 = vunpack.c.l.b16 %v329
        %v395 = vpack.c.b16 %v380, %v379
        %v396 = vpack.c.b16 %v382, %v381
        %v397 = vpack.c.b16 %v384, %v383
        %v398 = vpack.c.b16 %v386, %v385
        %v399 = vpack.c.b16 %v388, %v387
        %v400 = vpack.c.b16 %v390, %v389
        %v401 = vpack.c.b16 %v392, %v391
        %v402 = vpack.c.b16 %v394, %v393
        %411 = vmatprep.subr.bf16.mxu0 0
        %412 = vmatpush1.bf16.msra.mxu0 %v395
        %413 = vmatprep.subr.bf16.mxu0 0
        %414 = vmatpush1.bf16.msra.mxu0 %v396
        %415 = vmatprep.subr.bf16.mxu0 0
        %416 = vmatpush1.bf16.msra.mxu0 %v397
        %417 = vmatprep.subr.bf16.mxu0 0
        %418 = vmatpush1.bf16.msra.mxu0 %v398
        %419 = vmatprep.subr.bf16.mxu0 0
        %420 = vmatpush1.bf16.msra.mxu0 %v399
        %421 = vmatprep.subr.bf16.mxu0 0
        %422 = vmatpush1.bf16.msra.mxu0 %v400
        %423 = vmatprep.subr.bf16.mxu0 0
        %424 = vmatpush1.bf16.msra.mxu0 %v401
        %425 = vmatprep.subr.bf16.mxu0 0
        %426 = vmatpush1.bf16.msra.mxu0 %v402
        %427 = vmatprep.subr.bf16.mxu0 0
        %428 = vmatpush1.bf16.msra.mxu0 0
        %429 = vmatprep.subr.bf16.mxu0 0
        %430 = vmatpush1.bf16.msra.mxu0 0
        %431 = vmatprep.subr.bf16.mxu0 0
        %432 = vmatpush1.bf16.msra.mxu0 0
        %433 = vmatprep.subr.bf16.mxu0 0
        %434 = vmatpush1.bf16.msra.mxu0 0
        %435 = vmatprep.subr.bf16.mxu0 0
        %436 = vmatpush1.bf16.msra.mxu0 0
        %437 = vmatprep.subr.bf16.mxu0 0
        %438 = vmatpush1.bf16.msra.mxu0 0
        %439 = vmatprep.subr.bf16.mxu0 0
        %440 = vmatpush1.bf16.msra.mxu0 0
        %441 = vmatprep.subr.bf16.mxu0 0
        %442 = vmatpush1.bf16.msra.mxu0 0
        %443 = vmatprep.mubr.bf16.mxu0 0
        %444 = vmatmul.mubr.bf16.gmra.mrb[0].mxu0 %v349
        %v445 = vpop.f32.mrb[0].mxu0
        %v446 = vadd.f32 %v361, %v445
        %v447 = vpop.f32.mrb[0].mxu0
        %v448 = vpop.f32.mrb[0].mxu0
        %v449 = vadd.f32 %v361, %v448
        %v450 = vpop.f32.mrb[0].mxu0
        %451 = vmatprep.mubr.bf16.mxu0 0
        %452 = vmatmul.mubr.bf16.gmra.mrb[0].mxu0 %v350
        %v453 = vpop.f32.mrb[0].mxu0
        %v454 = vadd.f32 %v361, %v453
        %v455 = vpop.f32.mrb[0].mxu0
        %v456 = vpop.f32.mrb[0].mxu0
        %v457 = vadd.f32 %v361, %v456
        %v458 = vpop.f32.mrb[0].mxu0
        %459 = vmatprep.mubr.bf16.mxu0 0
        %460 = vmatmul.mubr.bf16.gmra.mrb[0].mxu0 %v351
        %v461 = vpop.f32.mrb[0].mxu0
        %v462 = vadd.f32 %v361, %v461
        %v463 = vpop.f32.mrb[0].mxu0
        %v464 = vpop.f32.mrb[0].mxu0
        %v465 = vadd.f32 %v361, %v464
        %v466 = vpop.f32.mrb[0].mxu0
        %467 = vmatprep.mubr.bf16.mxu0 0
        %468 = vmatmul.mubr.bf16.gmra.mrb[0].mxu0 %v352
        %v469 = vpop.f32.mrb[0].mxu0
        %v470 = vadd.f32 %v361, %v469
        %v471 = vpop.f32.mrb[0].mxu0
        %v472 = vpop.f32.mrb[0].mxu0
        %v473 = vadd.f32 %v361, %v472
        %v474 = vpop.f32.mrb[0].mxu0
        %475 = vmatprep.mubr.bf16.mxu0 0
        %476 = vmatmul.mubr.bf16.gmra.mrb[0].mxu0 %v353
        %v477 = vpop.f32.mrb[0].mxu0
        %v478 = vadd.f32 %v361, %v477
        %v479 = vpop.f32.mrb[0].mxu0
        %v480 = vpop.f32.mrb[0].mxu0
        %v481 = vadd.f32 %v361, %v480
        %v482 = vpop.f32.mrb[0].mxu0
        %483 = vmatprep.mubr.bf16.mxu0 0
        %484 = vmatmul.mubr.bf16.gmra.mrb[0].mxu0 %v354
        %v485 = vpop.f32.mrb[0].mxu0
        %v486 = vadd.f32 %v361, %v485
        %v487 = vpop.f32.mrb[0].mxu0
        %v488 = vpop.f32.mrb[0].mxu0
        %v489 = vadd.f32 %v361, %v488
        %v490 = vpop.f32.mrb[0].mxu0
        %491 = vmatprep.mubr.bf16.mxu0 0
        %492 = vmatmul.mubr.bf16.gmra.mrb[0].mxu0 %v355
        %v493 = vpop.f32.mrb[0].mxu0
        %v494 = vadd.f32 %v361, %v493
        %v495 = vpop.f32.mrb[0].mxu0
        %v496 = vpop.f32.mrb[0].mxu0
        %v497 = vadd.f32 %v361, %v496
        %v498 = vpop.f32.mrb[0].mxu0
        %499 = vmatprep.mubr.bf16.mxu0 0
        %500 = vmatmul.mubr.bf16.gmra.mrb[0].mxu0 %v356
        %v501 = vpop.f32.mrb[0].mxu0
        %v502 = vadd.f32 %v361, %v501
        %v503 = vpop.f32.mrb[0].mxu0
        %v504 = vpop.f32.mrb[0].mxu0
        %v505 = vadd.f32 %v361, %v504
        %v506 = vpop.f32.mrb[0].mxu0
        %507 = vdwg.mxu0
        %v508 = vmax.f32 %v446, 0.0
        %v509 = vmax.f32 %v449, 0.0
        %v510 = vmax.f32 %v454, 0.0
        %v511 = vmax.f32 %v457, 0.0
        %v512 = vmax.f32 %v462, 0.0
        %v513 = vmax.f32 %v465, 0.0
        %v514 = vmax.f32 %v470, 0.0
        %v515 = vmax.f32 %v473, 0.0
        %v516 = vmax.f32 %v478, 0.0
        %v517 = vmax.f32 %v481, 0.0
        %v518 = vmax.f32 %v486, 0.0
        %v519 = vmax.f32 %v489, 0.0
        %v520 = vmax.f32 %v494, 0.0
        %v521 = vmax.f32 %v497, 0.0
        %v522 = vmax.f32 %v502, 0.0
        %v523 = vmax.f32 %v505, 0.0
        %vm524 = vcmask 261120
        %525 = vst.msk [vmem:[#allocation2 + $0x10] sm:$0xff] %vm524, %v508
        %526 = vst.msk [vmem:[#allocation2 + $0x18] sm:$0xff] %vm524, %v509
        %527 = vst.msk [vmem:[#allocation2 + $0x20] sm:$0xff] %vm524, %v510
        %528 = vst.msk [vmem:[#allocation2 + $0x28] sm:$0xff] %vm524, %v511
        %529 = vst.msk [vmem:[#allocation2 + $0x30] sm:$0xff] %vm524, %v512
        %530 = vst.msk [vmem:[#allocation2 + $0x38] sm:$0xff] %vm524, %v513
        %531 = vst.msk [vmem:[#allocation2 + $0x40] sm:$0xff] %vm524, %v514
        %532 = vst.msk [vmem:[#allocation2 + $0x48] sm:$0xff] %vm524, %v515
        %533 = vst.msk [vmem:[#allocation2 + $0x50] sm:$0xff] %vm524, %v516
        %534 = vst.msk [vmem:[#allocation2 + $0x58] sm:$0xff] %vm524, %v517
        %535 = vst.msk [vmem:[#allocation2 + $0x60] sm:$0xff] %vm524, %v518
        %536 = vst.msk [vmem:[#allocation2 + $0x68] sm:$0xff] %vm524, %v519
        %537 = vst.msk [vmem:[#allocation2 + $0x70] sm:$0xff] %vm524, %v520
        %538 = vst.msk [vmem:[#allocation2 + $0x78] sm:$0xff] %vm524, %v521
        %539 = vst.msk [vmem:[#allocation2 + $0x80] sm:$0xff] %vm524, %v522
        %540 = vst.msk [vmem:[#allocation2 + $0x88] sm:$0xff] %vm524, %v523
        %p541 = scmp.eq.s32.totalorder %s29, 0
        // Predicated region
        $region53: #{tpu_custom_call.1} parent=47 // pred_check
          %p542 = pneg %p541
        $region54: #{tpu_custom_call.1} parent=47 // pred_check_branch
          %544 = sbr.rel (%p542) target = $region56
        $region55: #{tpu_custom_call.1} parent=47 // pred_region
          %545 = vst.msk [vmem:[#allocation2] sm:$0xff] %vm524, 0.0
          %546 = vst.msk [vmem:[#allocation2 + $0x8] sm:$0xff] %vm524, 0.0
        $region56: #{tpu_custom_call.1} parent=47 // pred_fallthru
          _
        %p547 = scmp.gt.s32.totalorder %s29, 0
        // Predicated region
        $region57: #{tpu_custom_call.1} parent=47 // pred_check
          %p548 = pneg %p547
        $region58: #{tpu_custom_call.1} parent=47 // pred_check_branch
          %550 = sbr.rel (%p548) target = $region60
        $region59: #{tpu_custom_call.1} parent=47 // pred_region
          %s551 = ssub.s32 %s313, 1
          %s552 = smul.u32 %s551, 16
          %s553 = scalar_lea.vmem %s280, %s552 [#allocation4]
          %v554 = vld [vmem:[%s553] sm:$0xff]
          %v555 = vld [vmem:[%s553 + $0x8] sm:$0xff]
          %v556 = vpack.c.bf16 %v555, %v554
          %557 = vmatprep.subr.bf16.mxu0 0
          %558 = vmatpush1.bf16.msra.mxu0 %v395
          %559 = vmatprep.subr.bf16.mxu0 0
          %560 = vmatpush1.bf16.msra.mxu0 %v396
          %561 = vmatprep.subr.bf16.mxu0 0
          %562 = vmatpush1.bf16.msra.mxu0 %v397
          %563 = vmatprep.subr.bf16.mxu0 0
          %564 = vmatpush1.bf16.msra.mxu0 %v398
          %565 = vmatprep.subr.bf16.mxu0 0
          %566 = vmatpush1.bf16.msra.mxu0 %v399
          %567 = vmatprep.subr.bf16.mxu0 0
          %568 = vmatpush1.bf16.msra.mxu0 %v400
          %569 = vmatprep.subr.bf16.mxu0 0
          %570 = vmatpush1.bf16.msra.mxu0 %v401
          %571 = vmatprep.subr.bf16.mxu0 0
          %572 = vmatpush1.bf16.msra.mxu0 %v402
          %573 = vmatprep.subr.bf16.mxu0 0
          %574 = vmatpush1.bf16.msra.mxu0 0
          %575 = vmatprep.subr.bf16.mxu0 0
          %576 = vmatpush1.bf16.msra.mxu0 0
          %577 = vmatprep.subr.bf16.mxu0 0
          %578 = vmatpush1.bf16.msra.mxu0 0
          %579 = vmatprep.subr.bf16.mxu0 0
          %580 = vmatpush1.bf16.msra.mxu0 0
          %581 = vmatprep.subr.bf16.mxu0 0
          %582 = vmatpush1.bf16.msra.mxu0 0
          %583 = vmatprep.subr.bf16.mxu0 0
          %584 = vmatpush1.bf16.msra.mxu0 0
          %585 = vmatprep.subr.bf16.mxu0 0
          %586 = vmatpush1.bf16.msra.mxu0 0
          %587 = vmatprep.subr.bf16.mxu0 0
          %588 = vmatpush1.bf16.msra.mxu0 0
          %589 = vmatprep.mubr.bf16.mxu0 0
          %590 = vmatmul.mubr.bf16.gmra.mrb[0].mxu0 %v556
          %v591 = vpop.f32.mrb[0].mxu0
          %v592 = vadd.f32 %v361, %v591
          %v593 = vpop.f32.mrb[0].mxu0
          %v594 = vpop.f32.mrb[0].mxu0
          %v595 = vadd.f32 %v361, %v594
          %v596 = vpop.f32.mrb[0].mxu0
          %597 = vdwg.mxu0
          %v598 = vmax.f32 %v592, 0.0
          %v599 = vmax.f32 %v595, 0.0
          %600 = vst.msk [vmem:[#allocation2] sm:$0xff] %vm524, %v598
          %601 = vst.msk [vmem:[#allocation2 + $0x8] sm:$0xff] %vm524, %v599
        $region60: #{tpu_custom_call.1} parent=47 // pred_fallthru
          _
        %p602 = scmp.eq.s32.totalorder %s29, 1
        // Predicated region
        $region61: #{tpu_custom_call.1} parent=47 // pred_check
          %p603 = pneg %p602
        $region62: #{tpu_custom_call.1} parent=47 // pred_check_branch
          %605 = sbr.rel (%p603) target = $region64
        $region63: #{tpu_custom_call.1} parent=47 // pred_region
          %606 = vst.msk [vmem:[#allocation2 + $0x90] sm:$0xff] %vm524, 0.0
          %607 = vst.msk [vmem:[#allocation2 + $0x98] sm:$0xff] %vm524, 0.0
        $region64: #{tpu_custom_call.1} parent=47 // pred_fallthru
          _
        %p608 = scmp.lt.s32.totalorder %s29, 1
        // Predicated region
        $region65: #{tpu_custom_call.1} parent=47 // pred_check
          %p609 = pneg %p608
        $region66: #{tpu_custom_call.1} parent=47 // pred_check_branch
          %611 = sbr.rel (%p609) target = $region68
        $region67: #{tpu_custom_call.1} parent=47 // pred_region
          %s612 = sadd.s32 %s313, 8
          %s613 = smul.u32 %s612, 16
          %s614 = scalar_lea.vmem %s280, %s613 [#allocation4]
          %v615 = vld [vmem:[%s614] sm:$0xff]
          %v616 = vld [vmem:[%s614 + $0x8] sm:$0xff]
          %v617 = vpack.c.bf16 %v616, %v615
          %618 = vmatprep.subr.bf16.mxu0 0
          %619 = vmatpush1.bf16.msra.mxu0 %v395
          %620 = vmatprep.subr.bf16.mxu0 0
          %621 = vmatpush1.bf16.msra.mxu0 %v396
          %622 = vmatprep.subr.bf16.mxu0 0
          %623 = vmatpush1.bf16.msra.mxu0 %v397
          %624 = vmatprep.subr.bf16.mxu0 0
          %625 = vmatpush1.bf16.msra.mxu0 %v398
          %626 = vmatprep.subr.bf16.mxu0 0
          %627 = vmatpush1.bf16.msra.mxu0 %v399
          %628 = vmatprep.subr.bf16.mxu0 0
          %629 = vmatpush1.bf16.msra.mxu0 %v400
          %630 = vmatprep.subr.bf16.mxu0 0
          %631 = vmatpush1.bf16.msra.mxu0 %v401
          %632 = vmatprep.subr.bf16.mxu0 0
          %633 = vmatpush1.bf16.msra.mxu0 %v402
          %634 = vmatprep.subr.bf16.mxu0 0
          %635 = vmatpush1.bf16.msra.mxu0 0
          %636 = vmatprep.subr.bf16.mxu0 0
          %637 = vmatpush1.bf16.msra.mxu0 0
          %638 = vmatprep.subr.bf16.mxu0 0
          %639 = vmatpush1.bf16.msra.mxu0 0
          %640 = vmatprep.subr.bf16.mxu0 0
          %641 = vmatpush1.bf16.msra.mxu0 0
          %642 = vmatprep.subr.bf16.mxu0 0
          %643 = vmatpush1.bf16.msra.mxu0 0
          %644 = vmatprep.subr.bf16.mxu0 0
          %645 = vmatpush1.bf16.msra.mxu0 0
          %646 = vmatprep.subr.bf16.mxu0 0
          %647 = vmatpush1.bf16.msra.mxu0 0
          %648 = vmatprep.subr.bf16.mxu0 0
          %649 = vmatpush1.bf16.msra.mxu0 0
          %650 = vmatprep.mubr.bf16.mxu0 0
          %651 = vmatmul.mubr.bf16.gmra.mrb[0].mxu0 %v617
          %v652 = vpop.f32.mrb[0].mxu0
          %v653 = vadd.f32 %v361, %v652
          %v654 = vpop.f32.mrb[0].mxu0
          %v655 = vpop.f32.mrb[0].mxu0
          %v656 = vadd.f32 %v361, %v655
          %v657 = vpop.f32.mrb[0].mxu0
          %658 = vdwg.mxu0
          %v659 = vmax.f32 %v653, 0.0
          %v660 = vmax.f32 %v656, 0.0
          %661 = vst.msk [vmem:[#allocation2 + $0x90] sm:$0xff] %vm524, %v659
          %662 = vst.msk [vmem:[#allocation2 + $0x98] sm:$0xff] %vm524, %v660
        $region68: #{tpu_custom_call.1} parent=47 // pred_fallthru
          _
        %v663 = vld [vmem:[#allocation2] sm:$0xff]
        %v664 = vld [vmem:[#allocation2 + $0x8] sm:$0xff]
        %v665 = vld [vmem:[#allocation2 + $0x10] sm:$0xff]
        %v666 = vld [vmem:[#allocation2 + $0x18] sm:$0xff]
        %v667 = vld [vmem:[#allocation2 + $0x20] sm:$0xff]
        %v668 = vld [vmem:[#allocation2 + $0x28] sm:$0xff]
        %v669 = vld [vmem:[#allocation2 + $0x30] sm:$0xff]
        %v670 = vld [vmem:[#allocation2 + $0x38] sm:$0xff]
        %v671 = vld [vmem:[#allocation2 + $0x40] sm:$0xff]
        %v672 = vld [vmem:[#allocation2 + $0x48] sm:$0xff]
        %v673 = vld [vmem:[#allocation2 + $0x50] sm:$0xff]
        %v674 = vld [vmem:[#allocation2 + $0x58] sm:$0xff]
        %v675 = vld [vmem:[#allocation2 + $0x60] sm:$0xff]
        %v676 = vld [vmem:[#allocation2 + $0x68] sm:$0xff]
        %v677 = vld [vmem:[#allocation2 + $0x70] sm:$0xff]
        %v678 = vld [vmem:[#allocation2 + $0x78] sm:$0xff]
        %v679 = vld [vmem:[#allocation2 + $0x80] sm:$0xff]
        %v680 = vld [vmem:[#allocation2 + $0x88] sm:$0xff]
        %v681 = vld [vmem:[#allocation2 + $0x90] sm:$0xff]
        %v682 = vld [vmem:[#allocation2 + $0x98] sm:$0xff]
        %v683 = vlaneseq
        %v684 = vshrl.u32 %v683, 7
        %v685 = vadd.s32 %v684, 8
        %v686 = vadd.s32 %v684, 16
        %v687 = vadd.s32 %v684, 24
        %v688 = vadd.s32 %v684, 32
        %v689 = vadd.s32 %v684, 40
        %v690 = vadd.s32 %v684, 48
        %v691 = vadd.s32 %v684, 56
        %v692 = vadd.s32 %v684, 64
        %v693 = vadd.s32 %v684, 72
        %v694 = vadd.s32 %v684, 80
        %v695 = vadd.s32 %v684, 88
        %v696 = vadd.s32 %v684, 96
        %v697 = vadd.s32 %v684, 104
        %v698 = vadd.s32 %v684, 112
        %v699 = vadd.s32 %v684, 120
        %v700 = vadd.s32 %v684, 128
        %v701 = vadd.s32 %v684, 136
        %v702 = vadd.s32 %v684, 144
        %v703 = vadd.s32 %v684, 152
        %vm704 = vcmp.lt.s32.totalorder %v684, 0
        %v705 = vsub.s32 0, %v684
        %v706 = vsel %vm704, %v705, %v684
        %v707 = vshrl.u32 %v706, 4
        %v708 = vand.u32 %v706, 15
        %v709 = vsub.s32 0, %v708
        %v710 = vsel %vm704, %v709, %v708
        %vm711 = vcmp.lt.s32.totalorder %v685, 0
        %v712 = vsub.s32 0, %v685
        %v713 = vsel %vm711, %v712, %v685
        %v714 = vshrl.u32 %v713, 4
        %v715 = vand.u32 %v713, 15
        %v716 = vsub.s32 0, %v715
        %v717 = vsel %vm711, %v716, %v715
        %vm718 = vcmp.lt.s32.totalorder %v686, 0
        %v719 = vsub.s32 0, %v686
        %v720 = vsel %vm718, %v719, %v686
        %v721 = vshrl.u32 %v720, 4
        %v722 = vand.u32 %v720, 15
        %v723 = vsub.s32 0, %v722
        %v724 = vsel %vm718, %v723, %v722
        %vm725 = vcmp.lt.s32.totalorder %v687, 0
        %v726 = vsub.s32 0, %v687
        %v727 = vsel %vm725, %v726, %v687
        %v728 = vshrl.u32 %v727, 4
        %v729 = vand.u32 %v727, 15
        %v730 = vsub.s32 0, %v729
        %v731 = vsel %vm725, %v730, %v729
        %vm732 = vcmp.lt.s32.totalorder %v688, 0
        %v733 = vsub.s32 0, %v688
        %v734 = vsel %vm732, %v733, %v688
        %v735 = vshrl.u32 %v734, 4
        %v736 = vand.u32 %v734, 15
        %v737 = vsub.s32 0, %v736
        %v738 = vsel %vm732, %v737, %v736
        %vm739 = vcmp.lt.s32.totalorder %v689, 0
        %v740 = vsub.s32 0, %v689
        %v741 = vsel %vm739, %v740, %v689
        %v742 = vshrl.u32 %v741, 4
        %v743 = vand.u32 %v741, 15
        %v744 = vsub.s32 0, %v743
        %v745 = vsel %vm739, %v744, %v743
        %vm746 = vcmp.lt.s32.totalorder %v690, 0
        %v747 = vsub.s32 0, %v690
        %v748 = vsel %vm746, %v747, %v690
        %v749 = vshrl.u32 %v748, 4
        %v750 = vand.u32 %v748, 15
        %v751 = vsub.s32 0, %v750
        %v752 = vsel %vm746, %v751, %v750
        %vm753 = vcmp.lt.s32.totalorder %v691, 0
        %v754 = vsub.s32 0, %v691
        %v755 = vsel %vm753, %v754, %v691
        %v756 = vshrl.u32 %v755, 4
        %v757 = vand.u32 %v755, 15
        %v758 = vsub.s32 0, %v757
        %v759 = vsel %vm753, %v758, %v757
        %vm760 = vcmp.lt.s32.totalorder %v692, 0
        %v761 = vsub.s32 0, %v692
        %v762 = vsel %vm760, %v761, %v692
        %v763 = vshrl.u32 %v762, 4
        %v764 = vand.u32 %v762, 15
        %v765 = vsub.s32 0, %v764
        %v766 = vsel %vm760, %v765, %v764
        %vm767 = vcmp.lt.s32.totalorder %v693, 0
        %v768 = vsub.s32 0, %v693
        %v769 = vsel %vm767, %v768, %v693
        %v770 = vshrl.u32 %v769, 4
        %v771 = vand.u32 %v769, 15
        %v772 = vsub.s32 0, %v771
        %v773 = vsel %vm767, %v772, %v771
        %vm774 = vcmp.lt.s32.totalorder %v694, 0
        %v775 = vsub.s32 0, %v694
        %v776 = vsel %vm774, %v775, %v694
        %v777 = vshrl.u32 %v776, 4
        %v778 = vand.u32 %v776, 15
        %v779 = vsub.s32 0, %v778
        %v780 = vsel %vm774, %v779, %v778
        %vm781 = vcmp.lt.s32.totalorder %v695, 0
        %v782 = vsub.s32 0, %v695
        %v783 = vsel %vm781, %v782, %v695
        %v784 = vshrl.u32 %v783, 4
        %v785 = vand.u32 %v783, 15
        %v786 = vsub.s32 0, %v785
        %v787 = vsel %vm781, %v786, %v785
        %vm788 = vcmp.lt.s32.totalorder %v696, 0
        %v789 = vsub.s32 0, %v696
        %v790 = vsel %vm788, %v789, %v696
        %v791 = vshrl.u32 %v790, 4
        %v792 = vand.u32 %v790, 15
        %v793 = vsub.s32 0, %v792
        %v794 = vsel %vm788, %v793, %v792
        %vm795 = vcmp.lt.s32.totalorder %v697, 0
        %v796 = vsub.s32 0, %v697
        %v797 = vsel %vm795, %v796, %v697
        %v798 = vshrl.u32 %v797, 4
        %v799 = vand.u32 %v797, 15
        %v800 = vsub.s32 0, %v799
        %v801 = vsel %vm795, %v800, %v799
        %vm802 = vcmp.lt.s32.totalorder %v698, 0
        %v803 = vsub.s32 0, %v698
        %v804 = vsel %vm802, %v803, %v698
        %v805 = vshrl.u32 %v804, 4
        %v806 = vand.u32 %v804, 15
        %v807 = vsub.s32 0, %v806
        %v808 = vsel %vm802, %v807, %v806
        %vm809 = vcmp.lt.s32.totalorder %v699, 0
        %v810 = vsub.s32 0, %v699
        %v811 = vsel %vm809, %v810, %v699
        %v812 = vshrl.u32 %v811, 4
        %v813 = vand.u32 %v811, 15
        %v814 = vsub.s32 0, %v813
        %v815 = vsel %vm809, %v814, %v813
        %vm816 = vcmp.lt.s32.totalorder %v700, 0
        %v817 = vsub.s32 0, %v700
        %v818 = vsel %vm816, %v817, %v700
        %v819 = vshrl.u32 %v818, 4
        %v820 = vand.u32 %v818, 15
        %v821 = vsub.s32 0, %v820
        %v822 = vsel %vm816, %v821, %v820
        %vm823 = vcmp.lt.s32.totalorder %v701, 0
        %v824 = vsub.s32 0, %v701
        %v825 = vsel %vm823, %v824, %v701
        %v826 = vshrl.u32 %v825, 4
        %v827 = vand.u32 %v825, 15
        %v828 = vsub.s32 0, %v827
        %v829 = vsel %vm823, %v828, %v827
        %vm830 = vcmp.lt.s32.totalorder %v702, 0
        %v831 = vsub.s32 0, %v702
        %v832 = vsel %vm830, %v831, %v702
        %v833 = vshrl.u32 %v832, 4
        %v834 = vand.u32 %v832, 15
        %v835 = vsub.s32 0, %v834
        %v836 = vsel %vm830, %v835, %v834
        %vm837 = vcmp.lt.s32.totalorder %v703, 0
        %v838 = vsub.s32 0, %v703
        %v839 = vsel %vm837, %v838, %v703
        %v840 = vshrl.u32 %v839, 4
        %v841 = vand.u32 %v839, 15
        %v842 = vsub.s32 0, %v841
        %v843 = vsel %vm837, %v842, %v841
        %vm844 = vcmp.ne.s32.totalorder %v710, 0
        %vm845 = vcmp.ne.s32.totalorder %v717, 0
        %vm846 = vcmp.ne.s32.totalorder %v724, 0
        %vm847 = vcmp.ne.s32.totalorder %v731, 0
        %vm848 = vcmp.ne.s32.totalorder %v738, 0
        %vm849 = vcmp.ne.s32.totalorder %v745, 0
        %vm850 = vcmp.ne.s32.totalorder %v752, 0
        %vm851 = vcmp.ne.s32.totalorder %v759, 0
        %vm852 = vcmp.ne.s32.totalorder %v766, 0
        %vm853 = vcmp.ne.s32.totalorder %v773, 0
        %vm854 = vcmp.ne.s32.totalorder %v780, 0
        %vm855 = vcmp.ne.s32.totalorder %v787, 0
        %vm856 = vcmp.ne.s32.totalorder %v794, 0
        %vm857 = vcmp.ne.s32.totalorder %v801, 0
        %vm858 = vcmp.ne.s32.totalorder %v808, 0
        %vm859 = vcmp.ne.s32.totalorder %v815, 0
        %vm860 = vcmp.ne.s32.totalorder %v822, 0
        %vm861 = vcmp.ne.s32.totalorder %v829, 0
        %vm862 = vcmp.ne.s32.totalorder %v836, 0
        %vm863 = vcmp.ne.s32.totalorder %v843, 0
        %vm864 = vcmp.lt.s32.totalorder %v710, 0
        %vm865 = vcmp.lt.s32.totalorder %v717, 0
        %vm866 = vcmp.lt.s32.totalorder %v724, 0
        %vm867 = vcmp.lt.s32.totalorder %v731, 0
        %vm868 = vcmp.lt.s32.totalorder %v738, 0
        %vm869 = vcmp.lt.s32.totalorder %v745, 0
        %vm870 = vcmp.lt.s32.totalorder %v752, 0
        %vm871 = vcmp.lt.s32.totalorder %v759, 0
        %vm872 = vcmp.lt.s32.totalorder %v766, 0
        %vm873 = vcmp.lt.s32.totalorder %v773, 0
        %vm874 = vcmp.lt.s32.totalorder %v780, 0
        %vm875 = vcmp.lt.s32.totalorder %v787, 0
        %vm876 = vcmp.lt.s32.totalorder %v794, 0
        %vm877 = vcmp.lt.s32.totalorder %v801, 0
        %vm878 = vcmp.lt.s32.totalorder %v808, 0
        %vm879 = vcmp.lt.s32.totalorder %v815, 0
        %vm880 = vcmp.lt.s32.totalorder %v822, 0
        %vm881 = vcmp.lt.s32.totalorder %v829, 0
        %vm882 = vcmp.lt.s32.totalorder %v836, 0
        %vm883 = vcmp.lt.s32.totalorder %v843, 0
        %vm884 = vmand %vm864, %vm844
        %vm885 = vmand %vm865, %vm845
        %vm886 = vmand %vm866, %vm846
        %vm887 = vmand %vm867, %vm847
        %vm888 = vmand %vm868, %vm848
        %vm889 = vmand %vm869, %vm849
        %vm890 = vmand %vm870, %vm850
        %vm891 = vmand %vm871, %vm851
        %vm892 = vmand %vm872, %vm852
        %vm893 = vmand %vm873, %vm853
        %vm894 = vmand %vm874, %vm854
        %vm895 = vmand %vm875, %vm855
        %vm896 = vmand %vm876, %vm856
        %vm897 = vmand %vm877, %vm857
        %vm898 = vmand %vm878, %vm858
        %vm899 = vmand %vm879, %vm859
        %vm900 = vmand %vm880, %vm860
        %vm901 = vmand %vm881, %vm861
        %vm902 = vmand %vm882, %vm862
        %vm903 = vmand %vm883, %vm863
        %v904 = vadd.s32 %v710, 16
        %v905 = vadd.s32 %v717, 16
        %v906 = vadd.s32 %v724, 16
        %v907 = vadd.s32 %v731, 16
        %v908 = vadd.s32 %v738, 16
        %v909 = vadd.s32 %v745, 16
        %v910 = vadd.s32 %v752, 16
        %v911 = vadd.s32 %v759, 16
        %v912 = vadd.s32 %v766, 16
        %v913 = vadd.s32 %v773, 16
        %v914 = vadd.s32 %v780, 16
        %v915 = vadd.s32 %v787, 16
        %v916 = vadd.s32 %v794, 16
        %v917 = vadd.s32 %v801, 16
        %v918 = vadd.s32 %v808, 16
        %v919 = vadd.s32 %v815, 16
        %v920 = vadd.s32 %v822, 16
        %v921 = vadd.s32 %v829, 16
        %v922 = vadd.s32 %v836, 16
        %v923 = vadd.s32 %v843, 16
        %v924 = vsel %vm884, %v904, %v710
        %v925 = vsel %vm885, %v905, %v717
        %v926 = vsel %vm886, %v906, %v724
        %v927 = vsel %vm887, %v907, %v731
        %v928 = vsel %vm888, %v908, %v738
        %v929 = vsel %vm889, %v909, %v745
        %v930 = vsel %vm890, %v910, %v752
        %v931 = vsel %vm891, %v911, %v759
        %v932 = vsel %vm892, %v912, %v766
        %v933 = vsel %vm893, %v913, %v773
        %v934 = vsel %vm894, %v914, %v780
        %v935 = vsel %vm895, %v915, %v787
        %v936 = vsel %vm896, %v916, %v794
        %v937 = vsel %vm897, %v917, %v801
        %v938 = vsel %vm898, %v918, %v808
        %v939 = vsel %vm899, %v919, %v815
        %v940 = vsel %vm900, %v920, %v822
        %v941 = vsel %vm901, %v921, %v829
        %v942 = vsel %vm902, %v922, %v836
        %v943 = vsel %vm903, %v923, %v843
        %vm944 = vcmp.ge.s32.totalorder %v924, 1
        %vm945 = vcmp.ge.s32.totalorder %v925, 1
        %vm946 = vcmp.ge.s32.totalorder %v926, 1
        %vm947 = vcmp.ge.s32.totalorder %v927, 1
        %vm948 = vcmp.ge.s32.totalorder %v928, 1
        %vm949 = vcmp.ge.s32.totalorder %v929, 1
        %vm950 = vcmp.ge.s32.totalorder %v930, 1
        %vm951 = vcmp.ge.s32.totalorder %v931, 1
        %vm952 = vcmp.ge.s32.totalorder %v932, 1
        %vm953 = vcmp.ge.s32.totalorder %v933, 1
        %vm954 = vcmp.ge.s32.totalorder %v934, 1
        %vm955 = vcmp.ge.s32.totalorder %v935, 1
        %vm956 = vcmp.ge.s32.totalorder %v936, 1
        %vm957 = vcmp.ge.s32.totalorder %v937, 1
        %vm958 = vcmp.ge.s32.totalorder %v938, 1
        %vm959 = vcmp.ge.s32.totalorder %v939, 1
        %vm960 = vcmp.ge.s32.totalorder %v940, 1
        %vm961 = vcmp.ge.s32.totalorder %v941, 1
        %vm962 = vcmp.ge.s32.totalorder %v942, 1
        %vm963 = vcmp.ge.s32.totalorder %v943, 1
        %v964 = vrot.slane %v663, 7
        %v965 = vrot.slane %v664, 7
        %v966 = vrot.slane %v665, 7
        %v967 = vrot.slane %v666, 7
        %v968 = vrot.slane %v667, 7
        %v969 = vrot.slane %v668, 7
        %v970 = vrot.slane %v669, 7
        %v971 = vrot.slane %v670, 7
        %v972 = vrot.slane %v671, 7
        %v973 = vrot.slane %v672, 7
        %v974 = vrot.slane %v673, 7
        %v975 = vrot.slane %v674, 7
        %v976 = vrot.slane %v675, 7
        %v977 = vrot.slane %v676, 7
        %v978 = vrot.slane %v677, 7
        %v979 = vrot.slane %v678, 7
        %v980 = vrot.slane %v679, 7
        %v981 = vrot.slane %v680, 7
        %v982 = vrot.slane %v681, 7
        %v983 = vrot.slane %v682, 7
        %vm984 = vcmp.lt.s32.totalorder %v684, 1
        %v985 = vsel %vm984, %v982, %v983
        %v986 = vsel %vm984, %v981, %v982
        %v987 = vsel %vm984, %v980, %v981
        %v988 = vsel %vm984, %v979, %v980
        %v989 = vsel %vm984, %v978, %v979
        %v990 = vsel %vm984, %v977, %v978
        %v991 = vsel %vm984, %v976, %v977
        %v992 = vsel %vm984, %v975, %v976
        %v993 = vsel %vm984, %v974, %v975
        %v994 = vsel %vm984, %v973, %v974
        %v995 = vsel %vm984, %v972, %v973
        %v996 = vsel %vm984, %v971, %v972
        %v997 = vsel %vm984, %v970, %v971
        %v998 = vsel %vm984, %v969, %v970
        %v999 = vsel %vm984, %v968, %v969
        %v1000 = vsel %vm984, %v967, %v968
        %v1001 = vsel %vm984, %v966, %v967
        %v1002 = vsel %vm984, %v965, %v966
        %v1003 = vsel %vm984, %v964, %v965
        %v1004 = vsel %vm984, %v983, %v964
        %v1005 = vsel %vm944, 1, 0
        %v1006 = vsel %vm945, 1, 0
        %v1007 = vsel %vm946, 1, 0
        %v1008 = vsel %vm947, 1, 0
        %v1009 = vsel %vm948, 1, 0
        %v1010 = vsel %vm949, 1, 0
        %v1011 = vsel %vm950, 1, 0
        %v1012 = vsel %vm951, 1, 0
        %v1013 = vsel %vm952, 1, 0
        %v1014 = vsel %vm953, 1, 0
        %v1015 = vsel %vm954, 1, 0
        %v1016 = vsel %vm955, 1, 0
        %v1017 = vsel %vm956, 1, 0
        %v1018 = vsel %vm957, 1, 0
        %v1019 = vsel %vm958, 1, 0
        %v1020 = vsel %vm959, 1, 0
        %v1021 = vsel %vm960, 1, 0
        %v1022 = vsel %vm961, 1, 0
        %v1023 = vsel %vm962, 1, 0
        %v1024 = vsel %vm963, 1, 0
        %vm1025 = vcmp.eq.s32.totalorder %v1005, 1
        %vm1026 = vcmp.eq.s32.totalorder %v1006, 1
        %vm1027 = vcmp.eq.s32.totalorder %v1007, 1
        %vm1028 = vcmp.eq.s32.totalorder %v1008, 1
        %vm1029 = vcmp.eq.s32.totalorder %v1009, 1
        %vm1030 = vcmp.eq.s32.totalorder %v1010, 1
        %vm1031 = vcmp.eq.s32.totalorder %v1011, 1
        %vm1032 = vcmp.eq.s32.totalorder %v1012, 1
        %vm1033 = vcmp.eq.s32.totalorder %v1013, 1
        %vm1034 = vcmp.eq.s32.totalorder %v1014, 1
        %vm1035 = vcmp.eq.s32.totalorder %v1015, 1
        %vm1036 = vcmp.eq.s32.totalorder %v1016, 1
        %vm1037 = vcmp.eq.s32.totalorder %v1017, 1
        %vm1038 = vcmp.eq.s32.totalorder %v1018, 1
        %vm1039 = vcmp.eq.s32.totalorder %v1019, 1
        %vm1040 = vcmp.eq.s32.totalorder %v1020, 1
        %vm1041 = vcmp.eq.s32.totalorder %v1021, 1
        %vm1042 = vcmp.eq.s32.totalorder %v1022, 1
        %vm1043 = vcmp.eq.s32.totalorder %v1023, 1
        %vm1044 = vcmp.eq.s32.totalorder %v1024, 1
        %v1045 = vsel %vm1025, %v1004, 0.0
        %v1046 = vsel %vm1026, %v1003, 0.0
        %v1047 = vsel %vm1027, %v1002, 0.0
        %v1048 = vsel %vm1028, %v1001, 0.0
        %v1049 = vsel %vm1029, %v1000, 0.0
        %v1050 = vsel %vm1030, %v999, 0.0
        %v1051 = vsel %vm1031, %v998, 0.0
        %v1052 = vsel %vm1032, %v997, 0.0
        %v1053 = vsel %vm1033, %v996, 0.0
        %v1054 = vsel %vm1034, %v995, 0.0
        %v1055 = vsel %vm1035, %v994, 0.0
        %v1056 = vsel %vm1036, %v993, 0.0
        %v1057 = vsel %vm1037, %v992, 0.0
        %v1058 = vsel %vm1038, %v991, 0.0
        %v1059 = vsel %vm1039, %v990, 0.0
        %v1060 = vsel %vm1040, %v989, 0.0
        %v1061 = vsel %vm1041, %v988, 0.0
        %v1062 = vsel %vm1042, %v987, 0.0
        %v1063 = vsel %vm1043, %v986, 0.0
        %v1064 = vsel %vm1044, %v985, 0.0
        %vm1065 = vcmp.le.s32.totalorder %v924, 14
        %vm1066 = vcmp.le.s32.totalorder %v925, 14
        %vm1067 = vcmp.le.s32.totalorder %v926, 14
        %vm1068 = vcmp.le.s32.totalorder %v927, 14
        %vm1069 = vcmp.le.s32.totalorder %v928, 14
        %vm1070 = vcmp.le.s32.totalorder %v929, 14
        %vm1071 = vcmp.le.s32.totalorder %v930, 14
        %vm1072 = vcmp.le.s32.totalorder %v931, 14
        %vm1073 = vcmp.le.s32.totalorder %v932, 14
        %vm1074 = vcmp.le.s32.totalorder %v933, 14
        %vm1075 = vcmp.le.s32.totalorder %v934, 14
        %vm1076 = vcmp.le.s32.totalorder %v935, 14
        %vm1077 = vcmp.le.s32.totalorder %v936, 14
        %vm1078 = vcmp.le.s32.totalorder %v937, 14
        %vm1079 = vcmp.le.s32.totalorder %v938, 14
        %vm1080 = vcmp.le.s32.totalorder %v939, 14
        %vm1081 = vcmp.le.s32.totalorder %v940, 14
        %vm1082 = vcmp.le.s32.totalorder %v941, 14
        %vm1083 = vcmp.le.s32.totalorder %v942, 14
        %vm1084 = vcmp.le.s32.totalorder %v943, 14
        %v1085 = vrot.slane %v663, 1
        %v1086 = vrot.slane %v664, 1
        %v1087 = vrot.slane %v665, 1
        %v1088 = vrot.slane %v666, 1
        %v1089 = vrot.slane %v667, 1
        %v1090 = vrot.slane %v668, 1
        %v1091 = vrot.slane %v669, 1
        %v1092 = vrot.slane %v670, 1
        %v1093 = vrot.slane %v671, 1
        %v1094 = vrot.slane %v672, 1
        %v1095 = vrot.slane %v673, 1
        %v1096 = vrot.slane %v674, 1
        %v1097 = vrot.slane %v675, 1
        %v1098 = vrot.slane %v676, 1
        %v1099 = vrot.slane %v677, 1
        %v1100 = vrot.slane %v678, 1
        %v1101 = vrot.slane %v679, 1
        %v1102 = vrot.slane %v680, 1
        %v1103 = vrot.slane %v681, 1
        %v1104 = vrot.slane %v682, 1
        %vm1105 = vcmp.lt.s32.totalorder %v684, 7
        %v1106 = vsel %vm1105, %v1103, %v1104
        %v1107 = vsel %vm1105, %v1102, %v1103
        %v1108 = vsel %vm1105, %v1101, %v1102
        %v1109 = vsel %vm1105, %v1100, %v1101
        %v1110 = vsel %vm1105, %v1099, %v1100
        %v1111 = vsel %vm1105, %v1098, %v1099
        %v1112 = vsel %vm1105, %v1097, %v1098
        %v1113 = vsel %vm1105, %v1096, %v1097
        %v1114 = vsel %vm1105, %v1095, %v1096
        %v1115 = vsel %vm1105, %v1094, %v1095
        %v1116 = vsel %vm1105, %v1093, %v1094
        %v1117 = vsel %vm1105, %v1092, %v1093
        %v1118 = vsel %vm1105, %v1091, %v1092
        %v1119 = vsel %vm1105, %v1090, %v1091
        %v1120 = vsel %vm1105, %v1089, %v1090
        %v1121 = vsel %vm1105, %v1088, %v1089
        %v1122 = vsel %vm1105, %v1087, %v1088
        %v1123 = vsel %vm1105, %v1086, %v1087
        %v1124 = vsel %vm1105, %v1085, %v1086
        %v1125 = vsel %vm1105, %v1104, %v1085
        %v1126 = vsel %vm1065, 1, 0
        %v1127 = vsel %vm1066, 1, 0
        %v1128 = vsel %vm1067, 1, 0
        %v1129 = vsel %vm1068, 1, 0
        %v1130 = vsel %vm1069, 1, 0
        %v1131 = vsel %vm1070, 1, 0
        %v1132 = vsel %vm1071, 1, 0
        %v1133 = vsel %vm1072, 1, 0
        %v1134 = vsel %vm1073, 1, 0
        %v1135 = vsel %vm1074, 1, 0
        %v1136 = vsel %vm1075, 1, 0
        %v1137 = vsel %vm1076, 1, 0
        %v1138 = vsel %vm1077, 1, 0
        %v1139 = vsel %vm1078, 1, 0
        %v1140 = vsel %vm1079, 1, 0
        %v1141 = vsel %vm1080, 1, 0
        %v1142 = vsel %vm1081, 1, 0
        %v1143 = vsel %vm1082, 1, 0
        %v1144 = vsel %vm1083, 1, 0
        %v1145 = vsel %vm1084, 1, 0
        %vm1146 = vcmp.eq.s32.totalorder %v1126, 1
        %vm1147 = vcmp.eq.s32.totalorder %v1127, 1
        %vm1148 = vcmp.eq.s32.totalorder %v1128, 1
        %vm1149 = vcmp.eq.s32.totalorder %v1129, 1
        %vm1150 = vcmp.eq.s32.totalorder %v1130, 1
        %vm1151 = vcmp.eq.s32.totalorder %v1131, 1
        %vm1152 = vcmp.eq.s32.totalorder %v1132, 1
        %vm1153 = vcmp.eq.s32.totalorder %v1133, 1
        %vm1154 = vcmp.eq.s32.totalorder %v1134, 1
        %vm1155 = vcmp.eq.s32.totalorder %v1135, 1
        %vm1156 = vcmp.eq.s32.totalorder %v1136, 1
        %vm1157 = vcmp.eq.s32.totalorder %v1137, 1
        %vm1158 = vcmp.eq.s32.totalorder %v1138, 1
        %vm1159 = vcmp.eq.s32.totalorder %v1139, 1
        %vm1160 = vcmp.eq.s32.totalorder %v1140, 1
        %vm1161 = vcmp.eq.s32.totalorder %v1141, 1
        %vm1162 = vcmp.eq.s32.totalorder %v1142, 1
        %vm1163 = vcmp.eq.s32.totalorder %v1143, 1
        %vm1164 = vcmp.eq.s32.totalorder %v1144, 1
        %vm1165 = vcmp.eq.s32.totalorder %v1145, 1
        %v1166 = vsel %vm1146, %v1124, 0.0
        %v1167 = vsel %vm1147, %v1123, 0.0
        %v1168 = vsel %vm1148, %v1122, 0.0
        %v1169 = vsel %vm1149, %v1121, 0.0
        %v1170 = vsel %vm1150, %v1120, 0.0
        %v1171 = vsel %vm1151, %v1119, 0.0
        %v1172 = vsel %vm1152, %v1118, 0.0
        %v1173 = vsel %vm1153, %v1117, 0.0
        %v1174 = vsel %vm1154, %v1116, 0.0
        %v1175 = vsel %vm1155, %v1115, 0.0
        %v1176 = vsel %vm1156, %v1114, 0.0
        %v1177 = vsel %vm1157, %v1113, 0.0
        %v1178 = vsel %vm1158, %v1112, 0.0
        %v1179 = vsel %vm1159, %v1111, 0.0
        %v1180 = vsel %vm1160, %v1110, 0.0
        %v1181 = vsel %vm1161, %v1109, 0.0
        %v1182 = vsel %vm1162, %v1108, 0.0
        %v1183 = vsel %vm1163, %v1107, 0.0
        %v1184 = vsel %vm1164, %v1106, 0.0
        %v1185 = vsel %vm1165, %v1125, 0.0
        %v1186 = vpack.c.bf16 %v1046, %v1045
        %v1187 = vpack.c.bf16 %v1048, %v1047
        %v1188 = vpack.c.bf16 %v1050, %v1049
        %v1189 = vpack.c.bf16 %v1052, %v1051
        %v1190 = vpack.c.bf16 %v1054, %v1053
        %v1191 = vpack.c.bf16 %v1056, %v1055
        %v1192 = vpack.c.bf16 %v1058, %v1057
        %v1193 = vpack.c.bf16 %v1060, %v1059
        %v1194 = vpack.c.bf16 %v1062, %v1061
        %v1195 = vpack.c.bf16 %v1064, %v1063
        %1196 = vst.msk [vmem:[#allocation3] sm:$0xff] %vm524, %v1186
        %1197 = vst.msk [vmem:[#allocation3 + $0x8] sm:$0xff] %vm524, %v1187
        %1198 = vst.msk [vmem:[#allocation3 + $0x10] sm:$0xff] %vm524, %v1188
        %1199 = vst.msk [vmem:[#allocation3 + $0x18] sm:$0xff] %vm524, %v1189
        %1200 = vst.msk [vmem:[#allocation3 + $0x20] sm:$0xff] %vm524, %v1190
        %1201 = vst.msk [vmem:[#allocation3 + $0x28] sm:$0xff] %vm524, %v1191
        %1202 = vst.msk [vmem:[#allocation3 + $0x30] sm:$0xff] %vm524, %v1192
        %1203 = vst.msk [vmem:[#allocation3 + $0x38] sm:$0xff] %vm524, %v1193
        %1204 = vst.msk [vmem:[#allocation3 + $0x40] sm:$0xff] %vm524, %v1194
        %1205 = vst.msk [vmem:[#allocation3 + $0x48] sm:$0xff] %vm524, %v1195
        %v1206 = vpack.c.bf16 %v664, %v663
        %v1207 = vpack.c.bf16 %v666, %v665
        %v1208 = vpack.c.bf16 %v668, %v667
        %v1209 = vpack.c.bf16 %v670, %v669
        %v1210 = vpack.c.bf16 %v672, %v671
        %v1211 = vpack.c.bf16 %v674, %v673
        %v1212 = vpack.c.bf16 %v676, %v675
        %v1213 = vpack.c.bf16 %v678, %v677
        %v1214 = vpack.c.bf16 %v680, %v679
        %v1215 = vpack.c.bf16 %v682, %v681
        %1226 = vrot.lane.b32.xlu0 %v1206, 32
        %v1227 = vpop.permute.xlu0 %1226
        %1228 = vrot.lane.b32.xlu0 %v1207, 32
        %v1229 = vpop.permute.xlu0 %1228
        %1230 = vrot.lane.b32.xlu0 %v1208, 32
        %v1231 = vpop.permute.xlu0 %1230
        %1232 = vrot.lane.b32.xlu0 %v1209, 32
        %v1233 = vpop.permute.xlu0 %1232
        %1234 = vrot.lane.b32.xlu0 %v1210, 32
        %v1235 = vpop.permute.xlu0 %1234
        %1236 = vrot.lane.b32.xlu0 %v1211, 32
        %v1237 = vpop.permute.xlu0 %1236
        %1238 = vrot.lane.b32.xlu0 %v1212, 32
        %v1239 = vpop.permute.xlu0 %1238
        %1240 = vrot.lane.b32.xlu0 %v1213, 32
        %v1241 = vpop.permute.xlu0 %1240
        %1242 = vrot.lane.b32.xlu0 %v1214, 32
        %v1243 = vpop.permute.xlu0 %1242
        %1244 = vrot.lane.b32.xlu0 %v1215, 32
        %v1245 = vpop.permute.xlu0 %1244
        %vm1256 = vcmask 523520
        %1257 = vst.msk [vmem:[#allocation3] sm:$0xff] %vm1256, %v1227
        %1258 = vst.msk [vmem:[#allocation3 + $0x8] sm:$0xff] %vm1256, %v1229
        %1259 = vst.msk [vmem:[#allocation3 + $0x10] sm:$0xff] %vm1256, %v1231
        %1260 = vst.msk [vmem:[#allocation3 + $0x18] sm:$0xff] %vm1256, %v1233
        %1261 = vst.msk [vmem:[#allocation3 + $0x20] sm:$0xff] %vm1256, %v1235
        %1262 = vst.msk [vmem:[#allocation3 + $0x28] sm:$0xff] %vm1256, %v1237
        %1263 = vst.msk [vmem:[#allocation3 + $0x30] sm:$0xff] %vm1256, %v1239
        %1264 = vst.msk [vmem:[#allocation3 + $0x38] sm:$0xff] %vm1256, %v1241
        %1265 = vst.msk [vmem:[#allocation3 + $0x40] sm:$0xff] %vm1256, %v1243
        %1266 = vst.msk [vmem:[#allocation3 + $0x48] sm:$0xff] %vm1256, %v1245
        %v1267 = vpack.c.bf16 %v1167, %v1166
        %v1268 = vpack.c.bf16 %v1169, %v1168
        %v1269 = vpack.c.bf16 %v1171, %v1170
        %v1270 = vpack.c.bf16 %v1173, %v1172
        %v1271 = vpack.c.bf16 %v1175, %v1174
        %v1272 = vpack.c.bf16 %v1177, %v1176
        %v1273 = vpack.c.bf16 %v1179, %v1178
        %v1274 = vpack.c.bf16 %v1181, %v1180
        %v1275 = vpack.c.bf16 %v1183, %v1182
        %v1276 = vpack.c.bf16 %v1185, %v1184
        %1287 = vrot.lane.b32.xlu0 %v1267, 64
        %v1288 = vpop.permute.xlu0 %1287
        %1289 = vrot.lane.b32.xlu0 %v1268, 64
        %v1290 = vpop.permute.xlu0 %1289
        %1291 = vrot.lane.b32.xlu0 %v1269, 64
        %v1292 = vpop.permute.xlu0 %1291
        %1293 = vrot.lane.b32.xlu0 %v1270, 64
        %v1294 = vpop.permute.xlu0 %1293
        %1295 = vrot.lane.b32.xlu0 %v1271, 64
        %v1296 = vpop.permute.xlu0 %1295
        %1297 = vrot.lane.b32.xlu0 %v1272, 64
        %v1298 = vpop.permute.xlu0 %1297
        %1299 = vrot.lane.b32.xlu0 %v1273, 64
        %v1300 = vpop.permute.xlu0 %1299
        %1301 = vrot.lane.b32.xlu0 %v1274, 64
        %v1302 = vpop.permute.xlu0 %1301
        %1303 = vrot.lane.b32.xlu0 %v1275, 64
        %v1304 = vpop.permute.xlu0 %1303
        %1305 = vrot.lane.b32.xlu0 %v1276, 64
        %v1306 = vpop.permute.xlu0 %1305
        %vm1317 = vcmask 785920
        %1318 = vst.msk [vmem:[#allocation3] sm:$0xff] %vm1317, %v1288
        %1319 = vst.msk [vmem:[#allocation3 + $0x8] sm:$0xff] %vm1317, %v1290
        %1320 = vst.msk [vmem:[#allocation3 + $0x10] sm:$0xff] %vm1317, %v1292
        %1321 = vst.msk [vmem:[#allocation3 + $0x18] sm:$0xff] %vm1317, %v1294
        %1322 = vst.msk [vmem:[#allocation3 + $0x20] sm:$0xff] %vm1317, %v1296
        %1323 = vst.msk [vmem:[#allocation3 + $0x28] sm:$0xff] %vm1317, %v1298
        %1324 = vst.msk [vmem:[#allocation3 + $0x30] sm:$0xff] %vm1317, %v1300
        %1325 = vst.msk [vmem:[#allocation3 + $0x38] sm:$0xff] %vm1317, %v1302
        %1326 = vst.msk [vmem:[#allocation3 + $0x40] sm:$0xff] %vm1317, %v1304
        %1327 = vst.msk [vmem:[#allocation3 + $0x48] sm:$0xff] %vm1317, %v1306
        %v1328 = vld [vmem:[#allocation3] sm:$0xff]
        %v1329 = vld [vmem:[#allocation3 + $0x8] sm:$0xff]
        %v1330 = vld [vmem:[#allocation3 + $0x10] sm:$0xff]
        %v1331 = vld [vmem:[#allocation3 + $0x18] sm:$0xff]
        %v1332 = vld [vmem:[#allocation3 + $0x20] sm:$0xff]
        %v1333 = vld [vmem:[#allocation3 + $0x28] sm:$0xff]
        %v1334 = vld [vmem:[#allocation3 + $0x30] sm:$0xff]
        %v1335 = vld [vmem:[#allocation3 + $0x38] sm:$0xff]
        %v1336 = vld [vmem:[%s3] sm:$0xf]
        %v1337 = vld [vmem:[%s3 + $0x4] sm:$0xf]
        %v1338 = vld [vmem:[%s3 + $0x8] sm:$0xf]
        %v1339 = vld [vmem:[%s3 + $0xc] sm:$0xf]
        %v1340 = vld [vmem:[%s3 + $0x10] sm:$0xf]
        %v1341 = vld [vmem:[%s3 + $0x14] sm:$0xf]
        %v1342 = vld [vmem:[%s3 + $0x18] sm:$0xf]
        %v1343 = vld [vmem:[%s3 + $0x1c] sm:$0xf]
        %v1344 = vld [vmem:[%s3 + $0x20] sm:$0xf]
        %v1345 = vld [vmem:[%s3 + $0x24] sm:$0xf]
        %v1346 = vld [vmem:[%s3 + $0x28] sm:$0xf]
        %v1347 = vld [vmem:[%s3 + $0x2c] sm:$0xf]
        %v1348 = vld [vmem:[#allocation3 + $0x40] sm:$0xff]
        %s1349 = scalar_lea.vmem %s3, 48
        %v1350 = vld [vmem:[%s1349] sm:$0xf]
        %v1351 = vld [vmem:[%s1349 + $0x4] sm:$0xf]
        %v1352 = vld [vmem:[%s1349 + $0x8] sm:$0xf]
        %v1353 = vld [vmem:[%s1349 + $0xc] sm:$0xf]
        %v1354 = vld [vmem:[%s1349 + $0x10] sm:$0xf]
        %v1355 = vld [vmem:[%s1349 + $0x14] sm:$0xf]
        %v1356 = vld [vmem:[%s1349 + $0x18] sm:$0xf]
        %v1357 = vld [vmem:[%s1349 + $0x1c] sm:$0xf]
        %v1358 = vld [vmem:[%s1349 + $0x20] sm:$0xf]
        %v1359 = vld [vmem:[%s1349 + $0x24] sm:$0xf]
        %v1360 = vld [vmem:[%s1349 + $0x28] sm:$0xf]
        %v1361 = vld [vmem:[%s1349 + $0x2c] sm:$0xf]
        %v1374 = vunpack.c.l.b16 %v1350
        %v1375 = vunpack.c.l.b16 %v1351
        %v1376 = vunpack.c.l.b16 %v1352
        %v1377 = vunpack.c.l.b16 %v1353
        %v1378 = vunpack.c.l.b16 %v1354
        %v1379 = vunpack.c.l.b16 %v1355
        %v1380 = vunpack.c.l.b16 %v1356
        %v1381 = vunpack.c.l.b16 %v1357
        %v1382 = vunpack.c.l.b16 %v1358
        %v1383 = vunpack.c.l.b16 %v1359
        %v1384 = vunpack.c.l.b16 %v1360
        %v1385 = vunpack.c.l.b16 %v1361
        %v1386 = vpack.c.b16 %v1375, %v1374
        %v1387 = vpack.c.b16 %v1377, %v1376
        %v1388 = vpack.c.b16 %v1379, %v1378
        %v1389 = vpack.c.b16 %v1381, %v1380
        %v1390 = vpack.c.b16 %v1383, %v1382
        %v1391 = vpack.c.b16 %v1385, %v1384
        %vm1398 = vcmask 785408
        %v1400 = vsel %vm1398, %v1329, 0
        %v1403 = vsel %vm1398, %v1330, 0
        %v1406 = vsel %vm1398, %v1331, 0
        %v1409 = vsel %vm1398, %v1332, 0
        %v1412 = vsel %vm1398, %v1333, 0
        %v1415 = vsel %vm1398, %v1334, 0
        %v1418 = vsel %vm1398, %v1335, 0
        %v1421 = vsel %vm1398, %v1348, 0
        %1423 = vmatprep.subr.bf16.mxu0 0
        %1424 = vmatpush1.bf16.msra.mxu0 %v1386
        %1425 = vmatprep.subr.bf16.mxu0 0
        %1426 = vmatpush1.bf16.msra.mxu0 %v1387
        %1427 = vmatprep.subr.bf16.mxu0 0
        %1428 = vmatpush1.bf16.msra.mxu0 %v1388
        %1429 = vmatprep.subr.bf16.mxu0 0
        %1430 = vmatpush1.bf16.msra.mxu0 %v1389
        %1431 = vmatprep.subr.bf16.mxu0 0
        %1432 = vmatpush1.bf16.msra.mxu0 %v1390
        %1433 = vmatprep.subr.bf16.mxu0 0
        %1434 = vmatpush1.bf16.msra.mxu0 %v1391
        %1435 = vmatprep.subr.bf16.mxu0 0
        %1436 = vmatpush1.bf16.msra.mxu0 0
        %1437 = vmatprep.subr.bf16.mxu0 0
        %1438 = vmatpush1.bf16.msra.mxu0 0
        %1439 = vmatprep.subr.bf16.mxu0 0
        %1440 = vmatpush1.bf16.msra.mxu0 0
        %1441 = vmatprep.subr.bf16.mxu0 0
        %1442 = vmatpush1.bf16.msra.mxu0 0
        %1443 = vmatprep.subr.bf16.mxu0 0
        %1444 = vmatpush1.bf16.msra.mxu0 0
        %1445 = vmatprep.subr.bf16.mxu0 0
        %1446 = vmatpush1.bf16.msra.mxu0 0
        %1447 = vmatprep.subr.bf16.mxu0 0
        %1448 = vmatpush1.bf16.msra.mxu0 0
        %1449 = vmatprep.subr.bf16.mxu0 0
        %1450 = vmatpush1.bf16.msra.mxu0 0
        %1451 = vmatprep.subr.bf16.mxu0 0
        %1452 = vmatpush1.bf16.msra.mxu0 0
        %1453 = vmatprep.subr.bf16.mxu0 0
        %1454 = vmatpush1.bf16.msra.mxu0 0
        %1455 = vmatprep.mubr.bf16.mxu0 0
        %1456 = vmatmul.mubr.bf16.gmra.mrb[0].mxu0 %v1400
        %v1457 = vpop.f32.mrb[0].mxu0
        %v1458 = vadd.f32 0.0, %v1457
        %v1459 = vpop.f32.mrb[0].mxu0
        %v1460 = vpop.f32.mrb[0].mxu0
        %v1461 = vadd.f32 0.0, %v1460
        %v1462 = vpop.f32.mrb[0].mxu0
        %1463 = vmatprep.mubr.bf16.mxu0 0
        %1464 = vmatmul.mubr.bf16.gmra.mrb[0].mxu0 %v1403
        %v1465 = vpop.f32.mrb[0].mxu0
        %v1466 = vadd.f32 0.0, %v1465
        %v1467 = vpop.f32.mrb[0].mxu0
        %v1468 = vpop.f32.mrb[0].mxu0
        %v1469 = vadd.f32 0.0, %v1468
        %v1470 = vpop.f32.mrb[0].mxu0
        %1471 = vmatprep.mubr.bf16.mxu0 0
        %1472 = vmatmul.mubr.bf16.gmra.mrb[0].mxu0 %v1406
        %v1473 = vpop.f32.mrb[0].mxu0
        %v1474 = vadd.f32 0.0, %v1473
        %v1475 = vpop.f32.mrb[0].mxu0
        %v1476 = vpop.f32.mrb[0].mxu0
        %v1477 = vadd.f32 0.0, %v1476
        %v1478 = vpop.f32.mrb[0].mxu0
        %1479 = vmatprep.mubr.bf16.mxu0 0
        %1480 = vmatmul.mubr.bf16.gmra.mrb[0].mxu0 %v1409
        %v1481 = vpop.f32.mrb[0].mxu0
        %v1482 = vadd.f32 0.0, %v1481
        %v1483 = vpop.f32.mrb[0].mxu0
        %v1484 = vpop.f32.mrb[0].mxu0
        %v1485 = vadd.f32 0.0, %v1484
        %v1486 = vpop.f32.mrb[0].mxu0
        %1487 = vmatprep.mubr.bf16.mxu0 0
        %1488 = vmatmul.mubr.bf16.gmra.mrb[0].mxu0 %v1412
        %v1489 = vpop.f32.mrb[0].mxu0
        %v1490 = vadd.f32 0.0, %v1489
        %v1491 = vpop.f32.mrb[0].mxu0
        %v1492 = vpop.f32.mrb[0].mxu0
        %v1493 = vadd.f32 0.0, %v1492
        %v1494 = vpop.f32.mrb[0].mxu0
        %1495 = vmatprep.mubr.bf16.mxu0 0
        %1496 = vmatmul.mubr.bf16.gmra.mrb[0].mxu0 %v1415
        %v1497 = vpop.f32.mrb[0].mxu0
        %v1498 = vadd.f32 0.0, %v1497
        %v1499 = vpop.f32.mrb[0].mxu0
        %v1500 = vpop.f32.mrb[0].mxu0
        %v1501 = vadd.f32 0.0, %v1500
        %v1502 = vpop.f32.mrb[0].mxu0
        %1503 = vmatprep.mubr.bf16.mxu0 0
        %1504 = vmatmul.mubr.bf16.gmra.mrb[0].mxu0 %v1418
        %v1505 = vpop.f32.mrb[0].mxu0
        %v1506 = vadd.f32 0.0, %v1505
        %v1507 = vpop.f32.mrb[0].mxu0
        %v1508 = vpop.f32.mrb[0].mxu0
        %v1509 = vadd.f32 0.0, %v1508
        %v1510 = vpop.f32.mrb[0].mxu0
        %1511 = vmatprep.mubr.bf16.mxu0 0
        %1512 = vmatmul.mubr.bf16.gmra.mrb[0].mxu0 %v1421
        %v1513 = vpop.f32.mrb[0].mxu0
        %v1514 = vadd.f32 0.0, %v1513
        %v1515 = vpop.f32.mrb[0].mxu0
        %v1516 = vpop.f32.mrb[0].mxu0
        %v1517 = vadd.f32 0.0, %v1516
        %v1518 = vpop.f32.mrb[0].mxu0
        %1519 = vdwg.mxu0
        %v1532 = vunpack.c.l.b16 %v1336
        %v1533 = vunpack.c.l.b16 %v1337
        %v1534 = vunpack.c.l.b16 %v1338
        %v1535 = vunpack.c.l.b16 %v1339
        %v1536 = vunpack.c.l.b16 %v1340
        %v1537 = vunpack.c.l.b16 %v1341
        %v1538 = vunpack.c.l.b16 %v1342
        %v1539 = vunpack.c.l.b16 %v1343
        %v1540 = vunpack.c.l.b16 %v1344
        %v1541 = vunpack.c.l.b16 %v1345
        %v1542 = vunpack.c.l.b16 %v1346
        %v1543 = vunpack.c.l.b16 %v1347
        %v1544 = vpack.c.b16 %v1533, %v1532
        %v1545 = vpack.c.b16 %v1535, %v1534
        %v1546 = vpack.c.b16 %v1537, %v1536
        %v1547 = vpack.c.b16 %v1539, %v1538
        %v1548 = vpack.c.b16 %v1541, %v1540
        %v1549 = vpack.c.b16 %v1543, %v1542
        %v1557 = vsel %vm1398, %v1328, 0
        %1559 = vmatprep.subr.bf16.mxu0 0
        %1560 = vmatpush1.bf16.msra.mxu0 %v1544
        %1561 = vmatprep.subr.bf16.mxu0 0
        %1562 = vmatpush1.bf16.msra.mxu0 %v1545
        %1563 = vmatprep.subr.bf16.mxu0 0
        %1564 = vmatpush1.bf16.msra.mxu0 %v1546
        %1565 = vmatprep.subr.bf16.mxu0 0
        %1566 = vmatpush1.bf16.msra.mxu0 %v1547
        %1567 = vmatprep.subr.bf16.mxu0 0
        %1568 = vmatpush1.bf16.msra.mxu0 %v1548
        %1569 = vmatprep.subr.bf16.mxu0 0
        %1570 = vmatpush1.bf16.msra.mxu0 %v1549
        %1571 = vmatprep.subr.bf16.mxu0 0
        %1572 = vmatpush1.bf16.msra.mxu0 0
        %1573 = vmatprep.subr.bf16.mxu0 0
        %1574 = vmatpush1.bf16.msra.mxu0 0
        %1575 = vmatprep.subr.bf16.mxu0 0
        %1576 = vmatpush1.bf16.msra.mxu0 0
        %1577 = vmatprep.subr.bf16.mxu0 0
        %1578 = vmatpush1.bf16.msra.mxu0 0
        %1579 = vmatprep.subr.bf16.mxu0 0
        %1580 = vmatpush1.bf16.msra.mxu0 0
        %1581 = vmatprep.subr.bf16.mxu0 0
        %1582 = vmatpush1.bf16.msra.mxu0 0
        %1583 = vmatprep.subr.bf16.mxu0 0
        %1584 = vmatpush1.bf16.msra.mxu0 0
        %1585 = vmatprep.subr.bf16.mxu0 0
        %1586 = vmatpush1.bf16.msra.mxu0 0
        %1587 = vmatprep.subr.bf16.mxu0 0
        %1588 = vmatpush1.bf16.msra.mxu0 0
        %1589 = vmatprep.subr.bf16.mxu0 0
        %1590 = vmatpush1.bf16.msra.mxu0 0
        %1591 = vmatprep.mubr.bf16.mxu0 0
        %1592 = vmatmul.mubr.bf16.gmra.mrb[0].mxu0 %v1557
        %v1593 = vpop.f32.mrb[0].mxu0
        %v1594 = vadd.f32 %v1458, %v1593
        %v1595 = vpop.f32.mrb[0].mxu0
        %v1596 = vpop.f32.mrb[0].mxu0
        %v1597 = vadd.f32 %v1461, %v1596
        %v1598 = vpop.f32.mrb[0].mxu0
        %1599 = vmatprep.mubr.bf16.mxu0 0
        %1600 = vmatmul.mubr.bf16.gmra.mrb[0].mxu0 %v1400
        %v1601 = vpop.f32.mrb[0].mxu0
        %v1602 = vadd.f32 %v1466, %v1601
        %v1603 = vpop.f32.mrb[0].mxu0
        %v1604 = vpop.f32.mrb[0].mxu0
        %v1605 = vadd.f32 %v1469, %v1604
        %v1606 = vpop.f32.mrb[0].mxu0
        %1607 = vmatprep.mubr.bf16.mxu0 0
        %1608 = vmatmul.mubr.bf16.gmra.mrb[0].mxu0 %v1403
        %v1609 = vpop.f32.mrb[0].mxu0
        %v1610 = vadd.f32 %v1474, %v1609
        %v1611 = vpop.f32.mrb[0].mxu0
        %v1612 = vpop.f32.mrb[0].mxu0
        %v1613 = vadd.f32 %v1477, %v1612
        %v1614 = vpop.f32.mrb[0].mxu0
        %1615 = vmatprep.mubr.bf16.mxu0 0
        %1616 = vmatmul.mubr.bf16.gmra.mrb[0].mxu0 %v1406
        %v1617 = vpop.f32.mrb[0].mxu0
        %v1618 = vadd.f32 %v1482, %v1617
        %v1619 = vpop.f32.mrb[0].mxu0
        %v1620 = vpop.f32.mrb[0].mxu0
        %v1621 = vadd.f32 %v1485, %v1620
        %v1622 = vpop.f32.mrb[0].mxu0
        %1623 = vmatprep.mubr.bf16.mxu0 0
        %1624 = vmatmul.mubr.bf16.gmra.mrb[0].mxu0 %v1409
        %v1625 = vpop.f32.mrb[0].mxu0
        %v1626 = vadd.f32 %v1490, %v1625
        %v1627 = vpop.f32.mrb[0].mxu0
        %v1628 = vpop.f32.mrb[0].mxu0
        %v1629 = vadd.f32 %v1493, %v1628
        %v1630 = vpop.f32.mrb[0].mxu0
        %1631 = vmatprep.mubr.bf16.mxu0 0
        %1632 = vmatmul.mubr.bf16.gmra.mrb[0].mxu0 %v1412
        %v1633 = vpop.f32.mrb[0].mxu0
        %v1634 = vadd.f32 %v1498, %v1633
        %v1635 = vpop.f32.mrb[0].mxu0
        %v1636 = vpop.f32.mrb[0].mxu0
        %v1637 = vadd.f32 %v1501, %v1636
        %v1638 = vpop.f32.mrb[0].mxu0
        %1639 = vmatprep.mubr.bf16.mxu0 0
        %1640 = vmatmul.mubr.bf16.gmra.mrb[0].mxu0 %v1415
        %v1641 = vpop.f32.mrb[0].mxu0
        %v1642 = vadd.f32 %v1506, %v1641
        %v1643 = vpop.f32.mrb[0].mxu0
        %v1644 = vpop.f32.mrb[0].mxu0
        %v1645 = vadd.f32 %v1509, %v1644
        %v1646 = vpop.f32.mrb[0].mxu0
        %1647 = vmatprep.mubr.bf16.mxu0 0
        %1648 = vmatmul.mubr.bf16.gmra.mrb[0].mxu0 %v1418
        %v1649 = vpop.f32.mrb[0].mxu0
        %v1650 = vadd.f32 %v1514, %v1649
        %v1651 = vpop.f32.mrb[0].mxu0
        %v1652 = vpop.f32.mrb[0].mxu0
        %v1653 = vadd.f32 %v1517, %v1652
        %v1654 = vpop.f32.mrb[0].mxu0
        %1655 = vdwg.mxu0
        %v1656 = vld [vmem:[#allocation3 + $0x10] sm:$0xff]
        %v1657 = vld [vmem:[#allocation3 + $0x18] sm:$0xff]
        %v1658 = vld [vmem:[#allocation3 + $0x20] sm:$0xff]
        %v1659 = vld [vmem:[#allocation3 + $0x28] sm:$0xff]
        %v1660 = vld [vmem:[#allocation3 + $0x30] sm:$0xff]
        %v1661 = vld [vmem:[#allocation3 + $0x38] sm:$0xff]
        %v1662 = vld [vmem:[#allocation3 + $0x40] sm:$0xff]
        %v1663 = vld [vmem:[#allocation3 + $0x48] sm:$0xff]
        %s1664 = scalar_lea.vmem %s3, 96
        %v1665 = vld [vmem:[%s1664] sm:$0xf]
        %v1666 = vld [vmem:[%s1664 + $0x4] sm:$0xf]
        %v1667 = vld [vmem:[%s1664 + $0x8] sm:$0xf]
        %v1668 = vld [vmem:[%s1664 + $0xc] sm:$0xf]
        %v1669 = vld [vmem:[%s1664 + $0x10] sm:$0xf]
        %v1670 = vld [vmem:[%s1664 + $0x14] sm:$0xf]
        %v1671 = vld [vmem:[%s1664 + $0x18] sm:$0xf]
        %v1672 = vld [vmem:[%s1664 + $0x1c] sm:$0xf]
        %v1673 = vld [vmem:[%s1664 + $0x20] sm:$0xf]
        %v1674 = vld [vmem:[%s1664 + $0x24] sm:$0xf]
        %v1675 = vld [vmem:[%s1664 + $0x28] sm:$0xf]
        %v1676 = vld [vmem:[%s1664 + $0x2c] sm:$0xf]
        %v1689 = vunpack.c.l.b16 %v1665
        %v1690 = vunpack.c.l.b16 %v1666
        %v1691 = vunpack.c.l.b16 %v1667
        %v1692 = vunpack.c.l.b16 %v1668
        %v1693 = vunpack.c.l.b16 %v1669
        %v1694 = vunpack.c.l.b16 %v1670
        %v1695 = vunpack.c.l.b16 %v1671
        %v1696 = vunpack.c.l.b16 %v1672
        %v1697 = vunpack.c.l.b16 %v1673
        %v1698 = vunpack.c.l.b16 %v1674
        %v1699 = vunpack.c.l.b16 %v1675
        %v1700 = vunpack.c.l.b16 %v1676
        %v1701 = vpack.c.b16 %v1690, %v1689
        %v1702 = vpack.c.b16 %v1692, %v1691
        %v1703 = vpack.c.b16 %v1694, %v1693
        %v1704 = vpack.c.b16 %v1696, %v1695
        %v1705 = vpack.c.b16 %v1698, %v1697
        %v1706 = vpack.c.b16 %v1700, %v1699
        %v1714 = vsel %vm1398, %v1656, 0
        %v1717 = vsel %vm1398, %v1657, 0
        %v1720 = vsel %vm1398, %v1658, 0
        %v1723 = vsel %vm1398, %v1659, 0
        %v1726 = vsel %vm1398, %v1660, 0
        %v1729 = vsel %vm1398, %v1661, 0
        %v1732 = vsel %vm1398, %v1662, 0
        %v1735 = vsel %vm1398, %v1663, 0
        %1737 = vmatprep.subr.bf16.mxu0 0
        %1738 = vmatpush1.bf16.msra.mxu0 %v1701
        %1739 = vmatprep.subr.bf16.mxu0 0
        %1740 = vmatpush1.bf16.msra.mxu0 %v1702
        %1741 = vmatprep.subr.bf16.mxu0 0
        %1742 = vmatpush1.bf16.msra.mxu0 %v1703
        %1743 = vmatprep.subr.bf16.mxu0 0
        %1744 = vmatpush1.bf16.msra.mxu0 %v1704
        %1745 = vmatprep.subr.bf16.mxu0 0
        %1746 = vmatpush1.bf16.msra.mxu0 %v1705
        %1747 = vmatprep.subr.bf16.mxu0 0
        %1748 = vmatpush1.bf16.msra.mxu0 %v1706
        %1749 = vmatprep.subr.bf16.mxu0 0
        %1750 = vmatpush1.bf16.msra.mxu0 0
        %1751 = vmatprep.subr.bf16.mxu0 0
        %1752 = vmatpush1.bf16.msra.mxu0 0
        %1753 = vmatprep.subr.bf16.mxu0 0
        %1754 = vmatpush1.bf16.msra.mxu0 0
        %1755 = vmatprep.subr.bf16.mxu0 0
        %1756 = vmatpush1.bf16.msra.mxu0 0
        %1757 = vmatprep.subr.bf16.mxu0 0
        %1758 = vmatpush1.bf16.msra.mxu0 0
        %1759 = vmatprep.subr.bf16.mxu0 0
        %1760 = vmatpush1.bf16.msra.mxu0 0
        %1761 = vmatprep.subr.bf16.mxu0 0
        %1762 = vmatpush1.bf16.msra.mxu0 0
        %1763 = vmatprep.subr.bf16.mxu0 0
        %1764 = vmatpush1.bf16.msra.mxu0 0
        %1765 = vmatprep.subr.bf16.mxu0 0
        %1766 = vmatpush1.bf16.msra.mxu0 0
        %1767 = vmatprep.subr.bf16.mxu0 0
        %1768 = vmatpush1.bf16.msra.mxu0 0
        %1769 = vmatprep.mubr.bf16.mxu0 0
        %1770 = vmatmul.mubr.bf16.gmra.mrb[0].mxu0 %v1714
        %v1771 = vpop.f32.mrb[0].mxu0
        %v1772 = vadd.f32 0.0, %v1771
        %v1773 = vpop.f32.mrb[0].mxu0
        %v1774 = vpop.f32.mrb[0].mxu0
        %v1775 = vadd.f32 0.0, %v1774
        %v1776 = vpop.f32.mrb[0].mxu0
        %1777 = vmatprep.mubr.bf16.mxu0 0
        %1778 = vmatmul.mubr.bf16.gmra.mrb[0].mxu0 %v1717
        %v1779 = vpop.f32.mrb[0].mxu0
        %v1780 = vadd.f32 0.0, %v1779
        %v1781 = vpop.f32.mrb[0].mxu0
        %v1782 = vpop.f32.mrb[0].mxu0
        %v1783 = vadd.f32 0.0, %v1782
        %v1784 = vpop.f32.mrb[0].mxu0
        %1785 = vmatprep.mubr.bf16.mxu0 0
        %1786 = vmatmul.mubr.bf16.gmra.mrb[0].mxu0 %v1720
        %v1787 = vpop.f32.mrb[0].mxu0
        %v1788 = vadd.f32 0.0, %v1787
        %v1789 = vpop.f32.mrb[0].mxu0
        %v1790 = vpop.f32.mrb[0].mxu0
        %v1791 = vadd.f32 0.0, %v1790
        %v1792 = vpop.f32.mrb[0].mxu0
        %1793 = vmatprep.mubr.bf16.mxu0 0
        %1794 = vmatmul.mubr.bf16.gmra.mrb[0].mxu0 %v1723
        %v1795 = vpop.f32.mrb[0].mxu0
        %v1796 = vadd.f32 0.0, %v1795
        %v1797 = vpop.f32.mrb[0].mxu0
        %v1798 = vpop.f32.mrb[0].mxu0
        %v1799 = vadd.f32 0.0, %v1798
        %v1800 = vpop.f32.mrb[0].mxu0
        %1801 = vmatprep.mubr.bf16.mxu0 0
        %1802 = vmatmul.mubr.bf16.gmra.mrb[0].mxu0 %v1726
        %v1803 = vpop.f32.mrb[0].mxu0
        %v1804 = vadd.f32 0.0, %v1803
        %v1805 = vpop.f32.mrb[0].mxu0
        %v1806 = vpop.f32.mrb[0].mxu0
        %v1807 = vadd.f32 0.0, %v1806
        %v1808 = vpop.f32.mrb[0].mxu0
        %1809 = vmatprep.mubr.bf16.mxu0 0
        %1810 = vmatmul.mubr.bf16.gmra.mrb[0].mxu0 %v1729
        %v1811 = vpop.f32.mrb[0].mxu0
        %v1812 = vadd.f32 0.0, %v1811
        %v1813 = vpop.f32.mrb[0].mxu0
        %v1814 = vpop.f32.mrb[0].mxu0
        %v1815 = vadd.f32 0.0, %v1814
        %v1816 = vpop.f32.mrb[0].mxu0
        %1817 = vmatprep.mubr.bf16.mxu0 0
        %1818 = vmatmul.mubr.bf16.gmra.mrb[0].mxu0 %v1732
        %v1819 = vpop.f32.mrb[0].mxu0
        %v1820 = vadd.f32 0.0, %v1819
        %v1821 = vpop.f32.mrb[0].mxu0
        %v1822 = vpop.f32.mrb[0].mxu0
        %v1823 = vadd.f32 0.0, %v1822
        %v1824 = vpop.f32.mrb[0].mxu0
        %1825 = vmatprep.mubr.bf16.mxu0 0
        %1826 = vmatmul.mubr.bf16.gmra.mrb[0].mxu0 %v1735
        %v1827 = vpop.f32.mrb[0].mxu0
        %v1828 = vadd.f32 0.0, %v1827
        %v1829 = vpop.f32.mrb[0].mxu0
        %v1830 = vpop.f32.mrb[0].mxu0
        %v1831 = vadd.f32 0.0, %v1830
        %v1832 = vpop.f32.mrb[0].mxu0
        %1833 = vdwg.mxu0
        %v1834 = vadd.f32 %v1594, %v1772
        %v1835 = vadd.f32 %v1597, %v1775
        %v1836 = vadd.f32 %v1602, %v1780
        %v1837 = vadd.f32 %v1605, %v1783
        %v1838 = vadd.f32 %v1610, %v1788
        %v1839 = vadd.f32 %v1613, %v1791
        %v1840 = vadd.f32 %v1618, %v1796
        %v1841 = vadd.f32 %v1621, %v1799
        %v1842 = vadd.f32 %v1626, %v1804
        %v1843 = vadd.f32 %v1629, %v1807
        %v1844 = vadd.f32 %v1634, %v1812
        %v1845 = vadd.f32 %v1637, %v1815
        %v1846 = vadd.f32 %v1642, %v1820
        %v1847 = vadd.f32 %v1645, %v1823
        %v1848 = vadd.f32 %v1650, %v1828
        %v1849 = vadd.f32 %v1653, %v1831
        %v1850 = vld [vmem:[%s4] sm:$0x1]
        %v1852 = vlaneseq
        %v1853 = vshrl.u32 %v1852, 7
        %v1854 = vsub.s32 0, %v1853
        %v1855 = vrot.slane %v1850, %v1854
        %v1857 = vadd.f32 %v1834, %v1855
        %v1858 = vadd.f32 %v1835, %v1855
        %v1859 = vadd.f32 %v1836, %v1855
        %v1860 = vadd.f32 %v1837, %v1855
        %v1861 = vadd.f32 %v1838, %v1855
        %v1862 = vadd.f32 %v1839, %v1855
        %v1863 = vadd.f32 %v1840, %v1855
        %v1864 = vadd.f32 %v1841, %v1855
        %v1865 = vadd.f32 %v1842, %v1855
        %v1866 = vadd.f32 %v1843, %v1855
        %v1867 = vadd.f32 %v1844, %v1855
        %v1868 = vadd.f32 %v1845, %v1855
        %v1869 = vadd.f32 %v1846, %v1855
        %v1870 = vadd.f32 %v1847, %v1855
        %v1871 = vadd.f32 %v1848, %v1855
        %v1872 = vadd.f32 %v1849, %v1855
        %v1873 = vmax.f32 %v1857, 0.0
        %v1874 = vmax.f32 %v1858, 0.0
        %v1875 = vmax.f32 %v1859, 0.0
        %v1876 = vmax.f32 %v1860, 0.0
        %v1877 = vmax.f32 %v1861, 0.0
        %v1878 = vmax.f32 %v1862, 0.0
        %v1879 = vmax.f32 %v1863, 0.0
        %v1880 = vmax.f32 %v1864, 0.0
        %v1881 = vmax.f32 %v1865, 0.0
        %v1882 = vmax.f32 %v1866, 0.0
        %v1883 = vmax.f32 %v1867, 0.0
        %v1884 = vmax.f32 %v1868, 0.0
        %v1885 = vmax.f32 %v1869, 0.0
        %v1886 = vmax.f32 %v1870, 0.0
        %v1887 = vmax.f32 %v1871, 0.0
        %v1888 = vmax.f32 %v1872, 0.0
        %v1889 = vpack.c.bf16 %v1874, %v1873
        %v1890 = vpack.c.bf16 %v1876, %v1875
        %v1891 = vpack.c.bf16 %v1878, %v1877
        %v1892 = vpack.c.bf16 %v1880, %v1879
        %v1893 = vpack.c.bf16 %v1882, %v1881
        %v1894 = vpack.c.bf16 %v1884, %v1883
        %v1895 = vpack.c.bf16 %v1886, %v1885
        %v1896 = vpack.c.bf16 %v1888, %v1887
        %v1897 = vld [vmem:[%s5] sm:$0xf]
        %v1898 = vld [vmem:[%s5 + $0x4] sm:$0xf]
        %v1899 = vld [vmem:[%s5 + $0x8] sm:$0xf]
        %v1900 = vld [vmem:[%s5 + $0xc] sm:$0xf]
        %v1901 = vld [vmem:[%s332] sm:$0xff]
        %v1902 = vld [vmem:[%s332 + $0x8] sm:$0xff]
        %v1903 = vld [vmem:[%s332 + $0x10] sm:$0xff]
        %v1904 = vld [vmem:[%s332 + $0x18] sm:$0xff]
        %v1905 = vld [vmem:[%s332 + $0x20] sm:$0xff]
        %v1906 = vld [vmem:[%s332 + $0x28] sm:$0xff]
        %v1907 = vld [vmem:[%s332 + $0x30] sm:$0xff]
        %v1908 = vld [vmem:[%s332 + $0x38] sm:$0xff]
        %v1909 = vld [vmem:[%s332 + $0x40] sm:$0xff]
        %v1910 = vld [vmem:[%s332 + $0x48] sm:$0xff]
        %v1911 = vld [vmem:[%s332 + $0x50] sm:$0xff]
        %v1912 = vld [vmem:[%s332 + $0x58] sm:$0xff]
        %v1913 = vld [vmem:[%s332 + $0x60] sm:$0xff]
        %v1914 = vld [vmem:[%s332 + $0x68] sm:$0xff]
        %v1915 = vld [vmem:[%s332 + $0x70] sm:$0xff]
        %v1916 = vld [vmem:[%s332 + $0x78] sm:$0xff]
        %v1917 = vld [vmem:[%s6] sm:$0x1]
        %v1919 = vlaneseq
        %v1920 = vshrl.u32 %v1919, 7
        %v1921 = vsub.s32 0, %v1920
        %v1922 = vrot.slane %v1917, %v1921
        %v1928 = vunpack.c.l.b16 %v1897
        %v1929 = vunpack.c.l.b16 %v1898
        %v1930 = vunpack.c.l.b16 %v1899
        %v1931 = vunpack.c.l.b16 %v1900
        %v1932 = vpack.c.b16 %v1929, %v1928
        %v1933 = vpack.c.b16 %v1931, %v1930
        %v1937 = vsel %vm524, %v1889, 0
        %v1940 = vsel %vm524, %v1890, 0
        %v1943 = vsel %vm524, %v1891, 0
        %v1946 = vsel %vm524, %v1892, 0
        %v1949 = vsel %vm524, %v1893, 0
        %v1952 = vsel %vm524, %v1894, 0
        %v1955 = vsel %vm524, %v1895, 0
        %v1958 = vsel %vm524, %v1896, 0
        %1960 = vmatprep.subr.bf16.mxu0 0
        %1961 = vmatpush1.bf16.msra.mxu0 %v1932
        %1962 = vmatprep.subr.bf16.mxu0 0
        %1963 = vmatpush1.bf16.msra.mxu0 %v1933
        %1964 = vmatprep.subr.bf16.mxu0 0
        %1965 = vmatpush1.bf16.msra.mxu0 0
        %1966 = vmatprep.subr.bf16.mxu0 0
        %1967 = vmatpush1.bf16.msra.mxu0 0
        %1968 = vmatprep.subr.bf16.mxu0 0
        %1969 = vmatpush1.bf16.msra.mxu0 0
        %1970 = vmatprep.subr.bf16.mxu0 0
        %1971 = vmatpush1.bf16.msra.mxu0 0
        %1972 = vmatprep.subr.bf16.mxu0 0
        %1973 = vmatpush1.bf16.msra.mxu0 0
        %1974 = vmatprep.subr.bf16.mxu0 0
        %1975 = vmatpush1.bf16.msra.mxu0 0
        %1976 = vmatprep.subr.bf16.mxu0 0
        %1977 = vmatpush1.bf16.msra.mxu0 0
        %1978 = vmatprep.subr.bf16.mxu0 0
        %1979 = vmatpush1.bf16.msra.mxu0 0
        %1980 = vmatprep.subr.bf16.mxu0 0
        %1981 = vmatpush1.bf16.msra.mxu0 0
        %1982 = vmatprep.subr.bf16.mxu0 0
        %1983 = vmatpush1.bf16.msra.mxu0 0
        %1984 = vmatprep.subr.bf16.mxu0 0
        %1985 = vmatpush1.bf16.msra.mxu0 0
        %1986 = vmatprep.subr.bf16.mxu0 0
        %1987 = vmatpush1.bf16.msra.mxu0 0
        %1988 = vmatprep.subr.bf16.mxu0 0
        %1989 = vmatpush1.bf16.msra.mxu0 0
        %1990 = vmatprep.subr.bf16.mxu0 0
        %1991 = vmatpush1.bf16.msra.mxu0 0
        %1992 = vmatprep.mubr.bf16.mxu0 0
        %1993 = vmatmul.mubr.bf16.gmra.mrb[0].mxu0 %v1937
        %v1994 = vpop.f32.mrb[0].mxu0
        %v1995 = vadd.f32 %v1922, %v1994
        %v1996 = vpop.f32.mrb[0].mxu0
        %v1997 = vpop.f32.mrb[0].mxu0
        %v1998 = vadd.f32 %v1922, %v1997
        %v1999 = vpop.f32.mrb[0].mxu0
        %2000 = vmatprep.mubr.bf16.mxu0 0
        %2001 = vmatmul.mubr.bf16.gmra.mrb[0].mxu0 %v1940
        %v2002 = vpop.f32.mrb[0].mxu0
        %v2003 = vadd.f32 %v1922, %v2002
        %v2004 = vpop.f32.mrb[0].mxu0
        %v2005 = vpop.f32.mrb[0].mxu0
        %v2006 = vadd.f32 %v1922, %v2005
        %v2007 = vpop.f32.mrb[0].mxu0
        %2008 = vmatprep.mubr.bf16.mxu0 0
        %2009 = vmatmul.mubr.bf16.gmra.mrb[0].mxu0 %v1943
        %v2010 = vpop.f32.mrb[0].mxu0
        %v2011 = vadd.f32 %v1922, %v2010
        %v2012 = vpop.f32.mrb[0].mxu0
        %v2013 = vpop.f32.mrb[0].mxu0
        %v2014 = vadd.f32 %v1922, %v2013
        %v2015 = vpop.f32.mrb[0].mxu0
        %2016 = vmatprep.mubr.bf16.mxu0 0
        %2017 = vmatmul.mubr.bf16.gmra.mrb[0].mxu0 %v1946
        %v2018 = vpop.f32.mrb[0].mxu0
        %v2019 = vadd.f32 %v1922, %v2018
        %v2020 = vpop.f32.mrb[0].mxu0
        %v2021 = vpop.f32.mrb[0].mxu0
        %v2022 = vadd.f32 %v1922, %v2021
        %v2023 = vpop.f32.mrb[0].mxu0
        %2024 = vmatprep.mubr.bf16.mxu0 0
        %2025 = vmatmul.mubr.bf16.gmra.mrb[0].mxu0 %v1949
        %v2026 = vpop.f32.mrb[0].mxu0
        %v2027 = vadd.f32 %v1922, %v2026
        %v2028 = vpop.f32.mrb[0].mxu0
        %v2029 = vpop.f32.mrb[0].mxu0
        %v2030 = vadd.f32 %v1922, %v2029
        %v2031 = vpop.f32.mrb[0].mxu0
        %2032 = vmatprep.mubr.bf16.mxu0 0
        %2033 = vmatmul.mubr.bf16.gmra.mrb[0].mxu0 %v1952
        %v2034 = vpop.f32.mrb[0].mxu0
        %v2035 = vadd.f32 %v1922, %v2034
        %v2036 = vpop.f32.mrb[0].mxu0
        %v2037 = vpop.f32.mrb[0].mxu0
        %v2038 = vadd.f32 %v1922, %v2037
        %v2039 = vpop.f32.mrb[0].mxu0
        %2040 = vmatprep.mubr.bf16.mxu0 0
        %2041 = vmatmul.mubr.bf16.gmra.mrb[0].mxu0 %v1955
        %v2042 = vpop.f32.mrb[0].mxu0
        %v2043 = vadd.f32 %v1922, %v2042
        %v2044 = vpop.f32.mrb[0].mxu0
        %v2045 = vpop.f32.mrb[0].mxu0
        %v2046 = vadd.f32 %v1922, %v2045
        %v2047 = vpop.f32.mrb[0].mxu0
        %2048 = vmatprep.mubr.bf16.mxu0 0
        %2049 = vmatmul.mubr.bf16.gmra.mrb[0].mxu0 %v1958
        %v2050 = vpop.f32.mrb[0].mxu0
        %v2051 = vadd.f32 %v1922, %v2050
        %v2052 = vpop.f32.mrb[0].mxu0
        %v2053 = vpop.f32.mrb[0].mxu0
        %v2054 = vadd.f32 %v1922, %v2053
        %v2055 = vpop.f32.mrb[0].mxu0
        %2056 = vdwg.mxu0
        %v2057 = vadd.f32 %v1995, %v1901
        %v2058 = vadd.f32 %v1998, %v1902
        %v2059 = vadd.f32 %v2003, %v1903
        %v2060 = vadd.f32 %v2006, %v1904
        %v2061 = vadd.f32 %v2011, %v1905
        %v2062 = vadd.f32 %v2014, %v1906
        %v2063 = vadd.f32 %v2019, %v1907
        %v2064 = vadd.f32 %v2022, %v1908
        %v2065 = vadd.f32 %v2027, %v1909
        %v2066 = vadd.f32 %v2030, %v1910
        %v2067 = vadd.f32 %v2035, %v1911
        %v2068 = vadd.f32 %v2038, %v1912
        %v2069 = vadd.f32 %v2043, %v1913
        %v2070 = vadd.f32 %v2046, %v1914
        %v2071 = vadd.f32 %v2051, %v1915
        %v2072 = vadd.f32 %v2054, %v1916
        %v2073 = vmax.f32 %v2057, 0.0
        %v2074 = vmax.f32 %v2058, 0.0
        %v2075 = vmax.f32 %v2059, 0.0
        %v2076 = vmax.f32 %v2060, 0.0
        %v2077 = vmax.f32 %v2061, 0.0
        %v2078 = vmax.f32 %v2062, 0.0
        %v2079 = vmax.f32 %v2063, 0.0
        %v2080 = vmax.f32 %v2064, 0.0
        %v2081 = vmax.f32 %v2065, 0.0
        %v2082 = vmax.f32 %v2066, 0.0
        %v2083 = vmax.f32 %v2067, 0.0
        %v2084 = vmax.f32 %v2068, 0.0
        %v2085 = vmax.f32 %v2069, 0.0
        %v2086 = vmax.f32 %v2070, 0.0
        %v2087 = vmax.f32 %v2071, 0.0
        %v2088 = vmax.f32 %v2072, 0.0
        %2089 = vst [vmem:[%s310] sm:$0xff] %v2073
        %2090 = vst [vmem:[%s310 + $0x8] sm:$0xff] %v2074
        %2091 = vst [vmem:[%s310 + $0x10] sm:$0xff] %v2075
        %2092 = vst [vmem:[%s310 + $0x18] sm:$0xff] %v2076
        %2093 = vst [vmem:[%s310 + $0x20] sm:$0xff] %v2077
        %2094 = vst [vmem:[%s310 + $0x28] sm:$0xff] %v2078
        %2095 = vst [vmem:[%s310 + $0x30] sm:$0xff] %v2079
        %2096 = vst [vmem:[%s310 + $0x38] sm:$0xff] %v2080
        %2097 = vst [vmem:[%s310 + $0x40] sm:$0xff] %v2081
        %2098 = vst [vmem:[%s310 + $0x48] sm:$0xff] %v2082
        %2099 = vst [vmem:[%s310 + $0x50] sm:$0xff] %v2083
        %2100 = vst [vmem:[%s310 + $0x58] sm:$0xff] %v2084
        %2101 = vst [vmem:[%s310 + $0x60] sm:$0xff] %v2085
        %2102 = vst [vmem:[%s310 + $0x68] sm:$0xff] %v2086
        %2103 = vst [vmem:[%s310 + $0x70] sm:$0xff] %v2087
        %2104 = vst [vmem:[%s310 + $0x78] sm:$0xff] %v2088
        %s2105 = sand.u32 %s198, 1
        %s2106 = scalar_lea.sflag [#allocation6], %s2105
        %s2107 = sand.u32 %s198, 1
        %s2108 = smul.addr %s2107, 128
        %s2109 = scalar_lea.vmem [#allocation7], %s2108
        // Predicated region
        $region69: #{tpu_custom_call.1} parent=47 // pred_check
          %p2110 = pneg %p208
        $region70: #{tpu_custom_call.1} parent=47 // pred_check_branch
          %2112 = sbr.rel (%p2110) target = $region72
        $region71: #{tpu_custom_call.1} parent=47 // pred_region
          %s2113 = smul.u32 8, %s29
          %s2115 = ssub.s32 2048, 2048
          %2116 = vsyncadd %s2106, %s2115
          %s2117 = smul.addr %s2113, 2
          %s2118 = smul.addr %s28, 32
          %s2119 = sadd.s32 %s2117, %s2118
          %s2120 = smul.addr %s2119, 128
          %s2121 = scalar_lea.hbm %s7, %s2120
          %s2122 = sshll.u32 %s2109, 4
          %s2123 = int_to_ptr.vmem [resolvable:$true] %s2122
          %2128 = dma.vmem_to_hbm [thread:$0]  %s2123, 2048, %s2121, %s2106, 128, 128, 8
        $region72: #{tpu_custom_call.1} parent=47 // pred_fallthru
          _
      $region48: #{tpu_custom_call.1} parent=5 // pred_fallthru
        _
      %p2129 = scmp.le.s32.totalorder 2, %s19
      // Predicated region
      $region73: #{tpu_custom_call.1} parent=5 // pred_check
        %p2130 = pneg %p2129
      $region74: #{tpu_custom_call.1} parent=5 // pred_check_branch
        %2132 = sbr.rel (%p2130) target = $region76
      $region75: #{tpu_custom_call.1} parent=5 // pred_region
        %s2133 = ssub.s32 %s19, 2
        // Predicated region
        $region77: #{tpu_custom_call.1} parent=75 // pred_check
          %p2134 = pneg %p214
        $region78: #{tpu_custom_call.1} parent=75 // pred_check_branch
          %2136 = sbr.rel (%p2134) target = $region80
        $region79: #{tpu_custom_call.1} parent=75 // pred_region
          %s2137 = sand.u32 %s199, 1
          %s2138 = scalar_lea.sflag [#allocation6], %s2137
          %s2139 = sand.u32 %s199, 1
          %s2140 = smul.addr %s2139, 128
          %s2141 = scalar_lea.vmem [#allocation7], %s2140
          %2142 = dma.done %s2138, 2048
        $region80: #{tpu_custom_call.1} parent=75 // pred_fallthru
          _
      $region76: #{tpu_custom_call.1} parent=5 // pred_fallthru
        _
    $region6: #{tpu_custom_call.1} parent=1 // loop_footer
      %s23 = sadd.s32 1, %s19
    $region7: #{tpu_custom_call.1} parent=1 // loop_footer_branch
      %18 = sbr.rel target = $region3
    $region8: #{tpu_custom_call.1} parent=1 // loop_exit
      _
    %2143 = vsyncpa [#allocation5], 1
    %s2144 = scalar_lea.sflag [#allocation5], 1
    %2145 = vsyncpa %s2144, 1
    %2146 = vsyncpa [#allocation6], 1
    %s2147 = scalar_lea.sflag [#allocation6], 1
    %2148 = vsyncpa %s2147, 1

</llo_original>
